<compile_context>
chip_gen: v7x
topology: tpu7x:2x2x1
jax: 0.10.0
libtpu: 0.0.40
codegen_flags: <defaults>
</compile_context>

<pallas_src>
import functools

import jax
import jax.numpy as jnp
from jax.experimental import pallas as pl
from jax.experimental.pallas import tpu as pltpu

ALPHA = 0.01          # leaky_relu negative slope (Net.__init__ arg)

N_GROUPS = 22
GROUP_DIM = 1400
IN_DIM = N_GROUPS * GROUP_DIM      # 30800

DEFAULT_B_TILE = 64                # safe on v5e / v6e / v7x (see header math)
VMEM_LIMIT_BYTES = 48 * 1024 * 1024


def _round_up(n, m):
    return ((n + m - 1) // m) * m


def _leaky_relu(h, alpha):
    return jnp.where(h > 0, h, alpha * h)


def net_kernel(x3_ref, w1_ref, b1_ref, w2_ref, b2_ref, w3_ref, b3_ref,
               w4_ref, b4_ref, w5_ref, b5_ref, w6_ref, b6_ref, out_ref,
               *, alpha):
    # ---- 22 independent Linear(1400, 1) layers (block-diagonal contraction)
    # Grouped layout: y[b, g] = sum_k x3[b, g, k] * w1[g, k] + b1[g]
    x3 = x3_ref[...]                                            # [bt, 22, 1400]
    w1 = w1_ref[...]                                            # [22, 1400]
    y = jnp.sum(x3 * w1[None, :, :], axis=-1) + b1_ref[...]     # [bt, 22]

    # ---- MLP trunk (MXU matmuls, f32 accumulation) with leaky_relu ----------
    y = _leaky_relu(
        jnp.dot(y, w2_ref[...], preferred_element_type=jnp.float32) + b2_ref[...],
        alpha)                                                   # [bt, 1000]
    y = _leaky_relu(
        jnp.dot(y, w3_ref[...], preferred_element_type=jnp.float32) + b3_ref[...],
        alpha)                                                   # [bt, 100]
    y = _leaky_relu(
        jnp.dot(y, w4_ref[...], preferred_element_type=jnp.float32) + b4_ref[...],
        alpha)                                                   # [bt, 50]
    y = _leaky_relu(
        jnp.dot(y, w5_ref[...], preferred_element_type=jnp.float32) + b5_ref[...],
        alpha)                                                   # [bt, 10]
    out_ref[...] = (
        jnp.dot(y, w6_ref[...], preferred_element_type=jnp.float32) + b6_ref[...]
    )                                                            # [bt, 1]


def init_params(key):
    """Deterministic synthetic parameters, all float32, weights as [in, out]."""
    ks = jax.random.split(key, 12)
    scale = 0.02
    return {
        # 22 x Linear(1400, 1) stacked as [22, 1400] weight + [1, 22] bias
        "w1": jax.random.normal(ks[0], (N_GROUPS, GROUP_DIM), jnp.float32) * scale,
        "b1": jax.random.normal(ks[1], (1, N_GROUPS), jnp.float32) * scale,
        "w2": jax.random.normal(ks[2], (N_GROUPS, 1000), jnp.float32) * scale,
        "b2": jax.random.normal(ks[3], (1, 1000), jnp.float32) * scale,
        "w3": jax.random.normal(ks[4], (1000, 100), jnp.float32) * scale,
        "b3": jax.random.normal(ks[5], (1, 100), jnp.float32) * scale,
        "w4": jax.random.normal(ks[6], (100, 50), jnp.float32) * scale,
        "b4": jax.random.normal(ks[7], (1, 50), jnp.float32) * scale,
        "w5": jax.random.normal(ks[8], (50, 10), jnp.float32) * scale,
        "b5": jax.random.normal(ks[9], (1, 10), jnp.float32) * scale,
        "w6": jax.random.normal(ks[10], (10, 1), jnp.float32) * scale,
        "b6": jax.random.normal(ks[11], (1, 1), jnp.float32) * scale,
    }


@functools.partial(jax.jit, static_argnames=("b_tile",))
def net_forward(x, params, *, b_tile=DEFAULT_B_TILE):
    B = x.shape[0]
    assert x.shape[1] == IN_DIM

    # Batch tile: multiple of 8 (sublanes), no larger than needed.
    bt = min(_round_up(b_tile, 8), _round_up(B, 8))
    n_tiles = pl.cdiv(B, bt)
    B_pad = n_tiles * bt
    if B_pad != B:
        x = jnp.pad(x, ((0, B_pad - B), (0, 0)))

    # Glue reshape in plain JAX (bitcast, no data movement):
    # [B_pad, 30800] -> [B_pad, 22, 1400]
    x3 = x.reshape(B_pad, N_GROUPS, GROUP_DIM)

    def resident(arr):
        # Weights/biases: full-array block, constant index map -> loaded once,
        # resident in VMEM across all grid steps.
        nd = arr.ndim
        return pl.BlockSpec(arr.shape, lambda i, _nd=nd: (0,) * _nd)

    in_specs = [
        pl.BlockSpec((bt, N_GROUPS, GROUP_DIM), lambda i: (i, 0, 0)),  # x tile
        resident(params["w1"]), resident(params["b1"]),
        resident(params["w2"]), resident(params["b2"]),
        resident(params["w3"]), resident(params["b3"]),
        resident(params["w4"]), resident(params["b4"]),
        resident(params["w5"]), resident(params["b5"]),
        resident(params["w6"]), resident(params["b6"]),
    ]

    out = pl.pallas_call(
        functools.partial(net_kernel, alpha=ALPHA),
        out_shape=jax.ShapeDtypeStruct((B_pad, 1), jnp.float32),
        grid=(n_tiles,),
        in_specs=in_specs,
        out_specs=pl.BlockSpec((bt, 1), lambda i: (i, 0)),
        compiler_params=pltpu.CompilerParams(
            dimension_semantics=("parallel",),
            vmem_limit_bytes=VMEM_LIMIT_BYTES,
        ),
    )(x3,
      params["w1"], params["b1"],
      params["w2"], params["b2"],
      params["w3"], params["b3"],
      params["w4"], params["b4"],
      params["w5"], params["b5"],
      params["w6"], params["b6"])
    return out[:B]


def net_forward_ref(x, params):
    """Pure-JAX reference mirroring the PyTorch forward (full f32 precision)."""
    hp = jax.lax.Precision.HIGHEST
    B = x.shape[0]
    x3 = x.reshape(B, N_GROUPS, GROUP_DIM)
    y = jnp.einsum("bgk,gk->bg", x3, params["w1"], precision=hp) + params["b1"]

    def lrelu(h):
        return jnp.where(h > 0, h, ALPHA * h)

    y = lrelu(jnp.dot(y, params["w2"], precision=hp) + params["b2"])
    y = lrelu(jnp.dot(y, params["w3"], precision=hp) + params["b3"])
    y = lrelu(jnp.dot(y, params["w4"], precision=hp) + params["b4"])
    y = lrelu(jnp.dot(y, params["w5"], precision=hp) + params["b5"])
    return jnp.dot(y, params["w6"], precision=hp) + params["b6"]


if __name__ == "__main__":
    key = jax.random.PRNGKey(0)
    k_params, k_x1, k_x2 = jax.random.split(key, 3)

    params = init_params(k_params)

    # Small batch: pads to a single 8-row tile.
    B1 = 4
    x1 = jax.random.normal(k_x1, (B1, IN_DIM), jnp.float32)
    out1 = jax.block_until_ready(net_forward(x1, params))
    ref1 = net_forward_ref(x1, params)
    assert out1.shape == (B1, 1), out1.shape
    err1 = float(jnp.max(jnp.abs(out1 - ref1)))
    assert err1 < 1e-3, ("small-batch mismatch", err1)

    # Multi-tile path: 3 grid steps of 32 rows with batch padding (80 -> 96).
    B2 = 80
    x2 = jax.random.normal(k_x2, (B2, IN_DIM), jnp.float32)
    out2 = jax.block_until_ready(net_forward(x2, params, b_tile=32))
    ref2 = net_forward_ref(x2, params)
    assert out2.shape == (B2, 1), out2.shape
    err2 = float(jnp.max(jnp.abs(out2 - ref2)))
    assert err2 < 1e-3, ("multi-tile mismatch", err2)

    print("KERNEL_OK")
</pallas_src>

<mosaic_0001>
module attributes {stable_mosaic.version = 11 : i64} {
  func.func @net_kernel(%arg0: i32, %arg1: memref<8x22x1400xf32, #tpu.memory_space<vmem>>, %arg2: memref<22x1400xf32, #tpu.memory_space<vmem>>, %arg3: memref<1x22xf32, #tpu.memory_space<vmem>>, %arg4: memref<22x1000xf32, #tpu.memory_space<vmem>>, %arg5: memref<1x1000xf32, #tpu.memory_space<vmem>>, %arg6: memref<1000x100xf32, #tpu.memory_space<vmem>>, %arg7: memref<1x100xf32, #tpu.memory_space<vmem>>, %arg8: memref<100x50xf32, #tpu.memory_space<vmem>>, %arg9: memref<1x50xf32, #tpu.memory_space<vmem>>, %arg10: memref<50x10xf32, #tpu.memory_space<vmem>>, %arg11: memref<1x10xf32, #tpu.memory_space<vmem>>, %arg12: memref<10x1xf32, #tpu.memory_space<vmem>>, %arg13: memref<1x1xf32, #tpu.memory_space<vmem>>, %arg14: memref<8x1xf32, #tpu.memory_space<vmem>>) attributes {dimension_semantics = [#tpu.dimension_semantics<parallel>], iteration_bounds = array<i64: 1>, scalar_prefetch = 0 : i64, scratch_operands = 0 : i64, tpu.core_type = #tpu.core_type<tc>, window_params = [{transform_indices = @transform_0, window_bounds = array<i64: 8, 22, 1400>}, {pipeline_mode = #tpu.pipeline_mode<synchronous>, transform_indices = @transform_1, window_bounds = array<i64: 22, 1400>}, {pipeline_mode = #tpu.pipeline_mode<synchronous>, transform_indices = @transform_2, window_bounds = array<i64: 1, 22>}, {pipeline_mode = #tpu.pipeline_mode<synchronous>, transform_indices = @transform_3, window_bounds = array<i64: 22, 1000>}, {pipeline_mode = #tpu.pipeline_mode<synchronous>, transform_indices = @transform_4, window_bounds = array<i64: 1, 1000>}, {pipeline_mode = #tpu.pipeline_mode<synchronous>, transform_indices = @transform_5, window_bounds = array<i64: 1000, 100>}, {pipeline_mode = #tpu.pipeline_mode<synchronous>, transform_indices = @transform_6, window_bounds = array<i64: 1, 100>}, {pipeline_mode = #tpu.pipeline_mode<synchronous>, transform_indices = @transform_7, window_bounds = array<i64: 100, 50>}, {pipeline_mode = #tpu.pipeline_mode<synchronous>, transform_indices = @transform_8, window_bounds = array<i64: 1, 50>}, {pipeline_mode = #tpu.pipeline_mode<synchronous>, transform_indices = @transform_9, window_bounds = array<i64: 50, 10>}, {pipeline_mode = #tpu.pipeline_mode<synchronous>, transform_indices = @transform_10, window_bounds = array<i64: 1, 10>}, {pipeline_mode = #tpu.pipeline_mode<synchronous>, transform_indices = @transform_11, window_bounds = array<i64: 10, 1>}, {pipeline_mode = #tpu.pipeline_mode<synchronous>, transform_indices = @transform_12, window_bounds = array<i64: 1, 1>}, {transform_indices = @transform_13, window_bounds = array<i64: 8, 1>}]} {
    %c0 = arith.constant 0 : index
    %c0_0 = arith.constant 0 : index
    %c0_1 = arith.constant 0 : index
    %0 = vector.load %arg1[%c0, %c0_0, %c0_1] : memref<8x22x1400xf32, #tpu.memory_space<vmem>>, vector<8x22x1400xf32>
    %c0_2 = arith.constant 0 : index
    %c0_3 = arith.constant 0 : index
    %1 = vector.load %arg2[%c0_2, %c0_3] : memref<22x1400xf32, #tpu.memory_space<vmem>>, vector<22x1400xf32>
    %2 = vector.shape_cast %1 : vector<22x1400xf32> to vector<1x22x1400xf32>
    %3 = vector.broadcast %2 : vector<1x22x1400xf32> to vector<8x22x1400xf32>
    %4 = arith.mulf %0, %3 : vector<8x22x1400xf32>
    %cst = arith.constant dense<0.000000e+00> : vector<8x22xf32>
    %5 = vector.multi_reduction <add>, %4, %cst [2] : vector<8x22x1400xf32> to vector<8x22xf32>
    %c0_4 = arith.constant 0 : index
    %c0_5 = arith.constant 0 : index
    %6 = vector.load %arg3[%c0_4, %c0_5] : memref<1x22xf32, #tpu.memory_space<vmem>>, vector<1x22xf32>
    %7 = vector.broadcast %6 : vector<1x22xf32> to vector<8x22xf32>
    %8 = arith.addf %5, %7 : vector<8x22xf32>
    %c0_6 = arith.constant 0 : index
    %c0_7 = arith.constant 0 : index
    %9 = vector.load %arg4[%c0_6, %c0_7] : memref<22x1000xf32, #tpu.memory_space<vmem>>, vector<22x1000xf32>
    %cst_8 = arith.constant dense<0.000000e+00> : vector<8x1000xf32>
    %10 = tpu.matmul %8, %9, %cst_8 {dimension_numbers = #tpu.dot_dimension_numbers<[1], [0], [0], [1], [0, 0, 1, 1], [], []>} : vector<8x22xf32>, vector<22x1000xf32>, vector<8x1000xf32> -> vector<8x1000xf32>
    %c0_9 = arith.constant 0 : index
    %c0_10 = arith.constant 0 : index
    %11 = vector.load %arg5[%c0_9, %c0_10] : memref<1x1000xf32, #tpu.memory_space<vmem>>, vector<1x1000xf32>
    %12 = vector.broadcast %11 : vector<1x1000xf32> to vector<8x1000xf32>
    %13 = arith.addf %10, %12 : vector<8x1000xf32>
    %cst_11 = arith.constant 0.000000e+00 : f32
    %14 = vector.broadcast %cst_11 : f32 to vector<8x1000xf32>
    %15 = arith.cmpf ogt, %13, %14 : vector<8x1000xf32>
    %cst_12 = arith.constant 0.00999999977 : f32
    %16 = vector.broadcast %cst_12 : f32 to vector<8x1000xf32>
    %17 = arith.mulf %16, %13 : vector<8x1000xf32>
    %18 = arith.select %15, %13, %17 : vector<8x1000xi1>, vector<8x1000xf32>
    %c0_13 = arith.constant 0 : index
    %c0_14 = arith.constant 0 : index
    %19 = vector.load %arg6[%c0_13, %c0_14] : memref<1000x100xf32, #tpu.memory_space<vmem>>, vector<1000x100xf32>
    %cst_15 = arith.constant dense<0.000000e+00> : vector<8x100xf32>
    %20 = tpu.matmul %18, %19, %cst_15 {dimension_numbers = #tpu.dot_dimension_numbers<[1], [0], [0], [1], [0, 0, 1, 1], [], []>} : vector<8x1000xf32>, vector<1000x100xf32>, vector<8x100xf32> -> vector<8x100xf32>
    %c0_16 = arith.constant 0 : index
    %c0_17 = arith.constant 0 : index
    %21 = vector.load %arg7[%c0_16, %c0_17] : memref<1x100xf32, #tpu.memory_space<vmem>>, vector<1x100xf32>
    %22 = vector.broadcast %21 : vector<1x100xf32> to vector<8x100xf32>
    %23 = arith.addf %20, %22 : vector<8x100xf32>
    %cst_18 = arith.constant 0.000000e+00 : f32
    %24 = vector.broadcast %cst_18 : f32 to vector<8x100xf32>
    %25 = arith.cmpf ogt, %23, %24 : vector<8x100xf32>
    %cst_19 = arith.constant 0.00999999977 : f32
    %26 = vector.broadcast %cst_19 : f32 to vector<8x100xf32>
    %27 = arith.mulf %26, %23 : vector<8x100xf32>
    %28 = arith.select %25, %23, %27 : vector<8x100xi1>, vector<8x100xf32>
    %c0_20 = arith.constant 0 : index
    %c0_21 = arith.constant 0 : index
    %29 = vector.load %arg8[%c0_20, %c0_21] : memref<100x50xf32, #tpu.memory_space<vmem>>, vector<100x50xf32>
    %cst_22 = arith.constant dense<0.000000e+00> : vector<8x50xf32>
    %30 = tpu.matmul %28, %29, %cst_22 {dimension_numbers = #tpu.dot_dimension_numbers<[1], [0], [0], [1], [0, 0, 1, 1], [], []>} : vector<8x100xf32>, vector<100x50xf32>, vector<8x50xf32> -> vector<8x50xf32>
    %c0_23 = arith.constant 0 : index
    %c0_24 = arith.constant 0 : index
    %31 = vector.load %arg9[%c0_23, %c0_24] : memref<1x50xf32, #tpu.memory_space<vmem>>, vector<1x50xf32>
    %32 = vector.broadcast %31 : vector<1x50xf32> to vector<8x50xf32>
    %33 = arith.addf %30, %32 : vector<8x50xf32>
    %cst_25 = arith.constant 0.000000e+00 : f32
    %34 = vector.broadcast %cst_25 : f32 to vector<8x50xf32>
    %35 = arith.cmpf ogt, %33, %34 : vector<8x50xf32>
    %cst_26 = arith.constant 0.00999999977 : f32
    %36 = vector.broadcast %cst_26 : f32 to vector<8x50xf32>
    %37 = arith.mulf %36, %33 : vector<8x50xf32>
    %38 = arith.select %35, %33, %37 : vector<8x50xi1>, vector<8x50xf32>
    %c0_27 = arith.constant 0 : index
    %c0_28 = arith.constant 0 : index
    %39 = vector.load %arg10[%c0_27, %c0_28] : memref<50x10xf32, #tpu.memory_space<vmem>>, vector<50x10xf32>
    %cst_29 = arith.constant dense<0.000000e+00> : vector<8x10xf32>
    %40 = tpu.matmul %38, %39, %cst_29 {dimension_numbers = #tpu.dot_dimension_numbers<[1], [0], [0], [1], [0, 0, 1, 1], [], []>} : vector<8x50xf32>, vector<50x10xf32>, vector<8x10xf32> -> vector<8x10xf32>
    %c0_30 = arith.constant 0 : index
    %c0_31 = arith.constant 0 : index
    %41 = vector.load %arg11[%c0_30, %c0_31] : memref<1x10xf32, #tpu.memory_space<vmem>>, vector<1x10xf32>
    %42 = vector.broadcast %41 : vector<1x10xf32> to vector<8x10xf32>
    %43 = arith.addf %40, %42 : vector<8x10xf32>
    %cst_32 = arith.constant 0.000000e+00 : f32
    %44 = vector.broadcast %cst_32 : f32 to vector<8x10xf32>
    %45 = arith.cmpf ogt, %43, %44 : vector<8x10xf32>
    %cst_33 = arith.constant 0.00999999977 : f32
    %46 = vector.broadcast %cst_33 : f32 to vector<8x10xf32>
    %47 = arith.mulf %46, %43 : vector<8x10xf32>
    %48 = arith.select %45, %43, %47 : vector<8x10xi1>, vector<8x10xf32>
    %c0_34 = arith.constant 0 : index
    %c0_35 = arith.constant 0 : index
    %49 = vector.load %arg12[%c0_34, %c0_35] : memref<10x1xf32, #tpu.memory_space<vmem>>, vector<10x1xf32>
    %cst_36 = arith.constant dense<0.000000e+00> : vector<8x1xf32>
    %50 = tpu.matmul %48, %49, %cst_36 {dimension_numbers = #tpu.dot_dimension_numbers<[1], [0], [0], [1], [0, 0, 1, 1], [], []>} : vector<8x10xf32>, vector<10x1xf32>, vector<8x1xf32> -> vector<8x1xf32>
    %c0_37 = arith.constant 0 : index
    %c0_38 = arith.constant 0 : index
    %51 = vector.load %arg13[%c0_37, %c0_38] : memref<1x1xf32, #tpu.memory_space<vmem>>, vector<1x1xf32>
    %52 = vector.broadcast %51 : vector<1x1xf32> to vector<8x1xf32>
    %53 = arith.addf %50, %52 : vector<8x1xf32>
    %c0_39 = arith.constant 0 : index
    %c0_40 = arith.constant 0 : index
    %54 = vector.load %arg14[%c0_39, %c0_40] : memref<8x1xf32, #tpu.memory_space<vmem>>, vector<8x1xf32>
    tpu.vector_store %arg14[%c0_39, %c0_40], %53 {strides = array<i32>} : memref<8x1xf32, #tpu.memory_space<vmem>>, vector<8x1xf32>,
    return
  }
  func.func @transform_0(%arg0: i32) -> (i32, i32, i32) {
    %c0_i32 = arith.constant 0 : i32
    %c0_i32_0 = arith.constant 0 : i32
    %c0_i32_1 = arith.constant 0 : i32
    return %arg0, %c0_i32, %c0_i32_0 : i32, i32, i32
  }
  func.func @transform_1(%arg0: i32) -> (i32, i32) {
    %c0_i32 = arith.constant 0 : i32
    %c0_i32_0 = arith.constant 0 : i32
    %c0_i32_1 = arith.constant 0 : i32
    return %c0_i32, %c0_i32_0 : i32, i32
  }
  func.func @transform_2(%arg0: i32) -> (i32, i32) {
    %c0_i32 = arith.constant 0 : i32
    %c0_i32_0 = arith.constant 0 : i32
    %c0_i32_1 = arith.constant 0 : i32
    return %c0_i32, %c0_i32_0 : i32, i32
  }
  func.func @transform_3(%arg0: i32) -> (i32, i32) {
    %c0_i32 = arith.constant 0 : i32
    %c0_i32_0 = arith.constant 0 : i32
    %c0_i32_1 = arith.constant 0 : i32
    return %c0_i32, %c0_i32_0 : i32, i32
  }
  func.func @transform_4(%arg0: i32) -> (i32, i32) {
    %c0_i32 = arith.constant 0 : i32
    %c0_i32_0 = arith.constant 0 : i32
    %c0_i32_1 = arith.constant 0 : i32
    return %c0_i32, %c0_i32_0 : i32, i32
  }
  func.func @transform_5(%arg0: i32) -> (i32, i32) {
    %c0_i32 = arith.constant 0 : i32
    %c0_i32_0 = arith.constant 0 : i32
    %c0_i32_1 = arith.constant 0 : i32
    return %c0_i32, %c0_i32_0 : i32, i32
  }
  func.func @transform_6(%arg0: i32) -> (i32, i32) {
    %c0_i32 = arith.constant 0 : i32
    %c0_i32_0 = arith.constant 0 : i32
    %c0_i32_1 = arith.constant 0 : i32
    return %c0_i32, %c0_i32_0 : i32, i32
  }
  func.func @transform_7(%arg0: i32) -> (i32, i32) {
    %c0_i32 = arith.constant 0 : i32
    %c0_i32_0 = arith.constant 0 : i32
    %c0_i32_1 = arith.constant 0 : i32
    return %c0_i32, %c0_i32_0 : i32, i32
  }
  func.func @transform_8(%arg0: i32) -> (i32, i32) {
    %c0_i32 = arith.constant 0 : i32
    %c0_i32_0 = arith.constant 0 : i32
    %c0_i32_1 = arith.constant 0 : i32
    return %c0_i32, %c0_i32_0 : i32, i32
  }
  func.func @transform_9(%arg0: i32) -> (i32, i32) {
    %c0_i32 = arith.constant 0 : i32
    %c0_i32_0 = arith.constant 0 : i32
    %c0_i32_1 = arith.constant 0 : i32
    return %c0_i32, %c0_i32_0 : i32, i32
  }
  func.func @transform_10(%arg0: i32) -> (i32, i32) {
    %c0_i32 = arith.constant 0 : i32
    %c0_i32_0 = arith.constant 0 : i32
    %c0_i32_1 = arith.constant 0 : i32
    return %c0_i32, %c0_i32_0 : i32, i32
  }
  func.func @transform_11(%arg0: i32) -> (i32, i32) {
    %c0_i32 = arith.constant 0 : i32
    %c0_i32_0 = arith.constant 0 : i32
    %c0_i32_1 = arith.constant 0 : i32
    return %c0_i32, %c0_i32_0 : i32, i32
  }
  func.func @transform_12(%arg0: i32) -> (i32, i32) {
    %c0_i32 = arith.constant 0 : i32
    %c0_i32_0 = arith.constant 0 : i32
    %c0_i32_1 = arith.constant 0 : i32
    return %c0_i32, %c0_i32_0 : i32, i32
  }
  func.func @transform_13(%arg0: i32) -> (i32, i32) {
    %c0_i32 = arith.constant 0 : i32
    %c0_i32_0 = arith.constant 0 : i32
    return %arg0, %c0_i32 : i32, i32
  }
}

</mosaic_0001>

<llo_original>
// kernel: net_forward.1
$region0: #{net_forward.1}
  #allocation0 [shape = 'u32[]', space=smem, size = 0x4, offset = 0x4, fixed_abs, tag = 'smem constant byte address 0x4 - core index']
  #allocation1 [shape = 'u32[144,128]{1,0:T(1,128)}', space=vmem, size = 0x12000, scoped, tag = 'internal scratch']
  #allocation2 [shape = 'f32[1,1]{1,0:T(1,128)S(1)}', space=vmem, size = 0x200, scoped, tag = 'scoped memory for net_forward.1']
  %s0 = inlined_call_operand.vmem [shape: f32[8,22,1400], index: 0, kind: input, shape index: {}]
  %s1 = inlined_call_operand.vmem [shape: f32[22,1400], index: 1, kind: input, shape index: {}]
  %s2 = inlined_call_operand.vmem [shape: f32[1,22], index: 2, kind: input, shape index: {}]
  %s3 = inlined_call_operand.vmem [shape: f32[22,1000], index: 3, kind: input, shape index: {}]
  %s4 = inlined_call_operand.vmem [shape: f32[1,1000], index: 4, kind: input, shape index: {}]
  %s5 = inlined_call_operand.vmem [shape: f32[1000,100], index: 5, kind: input, shape index: {}]
  %s6 = inlined_call_operand.vmem [shape: f32[1,100], index: 6, kind: input, shape index: {}]
  %s7 = inlined_call_operand.vmem [shape: f32[100,50], index: 7, kind: input, shape index: {}]
  %s8 = inlined_call_operand.vmem [shape: f32[1,50], index: 8, kind: input, shape index: {}]
  %s9 = inlined_call_operand.vmem [shape: f32[50,10], index: 9, kind: input, shape index: {}]
  %s10 = inlined_call_operand.vmem [shape: f32[1,10], index: 10, kind: input, shape index: {}]
  %s11 = inlined_call_operand.vmem [shape: f32[10,1], index: 11, kind: input, shape index: {}]
  %s12 = inlined_call_operand.<no memory space> [shape: f32[1,1], index: 12, kind: input, shape index: {}]
  %s13 = inlined_call_operand.vmem [shape: f32[8,1], index: 13, kind: output, shape index: {}]
  %s14 = sld [smem:[#allocation0]]
  $region62: #{net_forward.1} parent=0
    _
  %s16 = ssub.s32 1, %s14
  %s17 = scalar_select 0, %s16, %s14
  %v18 = vstv %s12
  %19 = vst [vmem:[#allocation2] sm:$0x1] %v18
  // Predicated region
  $region2: #{net_forward.1} parent=0 // pred_check
    _
  $region3: #{net_forward.1} parent=0 // pred_check_branch
    %21 = sbr.rel (0) target = $region5
  $region4: #{net_forward.1} parent=0 // pred_region
    _
  $region5: #{net_forward.1} parent=0 // pred_fallthru
    _
  // Predicated region
  $region6: #{net_forward.1} parent=0 // pred_check
    _
  $region7: #{net_forward.1} parent=0 // pred_check_branch
    %23 = sbr.rel (0) target = $region9
  $region8: #{net_forward.1} parent=0 // pred_region
    _
  $region9: #{net_forward.1} parent=0 // pred_fallthru
    _
  // Predicated region
  $region10: #{net_forward.1} parent=0 // pred_check
    _
  $region11: #{net_forward.1} parent=0 // pred_check_branch
    %25 = sbr.rel (0) target = $region13
  $region12: #{net_forward.1} parent=0 // pred_region
    _
  $region13: #{net_forward.1} parent=0 // pred_fallthru
    _
  // Predicated region
  $region14: #{net_forward.1} parent=0 // pred_check
    _
  $region15: #{net_forward.1} parent=0 // pred_check_branch
    %27 = sbr.rel (0) target = $region17
  $region16: #{net_forward.1} parent=0 // pred_region
    _
  $region17: #{net_forward.1} parent=0 // pred_fallthru
    _
  // Predicated region
  $region18: #{net_forward.1} parent=0 // pred_check
    _
  $region19: #{net_forward.1} parent=0 // pred_check_branch
    %29 = sbr.rel (0) target = $region21
  $region20: #{net_forward.1} parent=0 // pred_region
    _
  $region21: #{net_forward.1} parent=0 // pred_fallthru
    _
  // Predicated region
  $region22: #{net_forward.1} parent=0 // pred_check
    _
  $region23: #{net_forward.1} parent=0 // pred_check_branch
    %31 = sbr.rel (0) target = $region25
  $region24: #{net_forward.1} parent=0 // pred_region
    _
  $region25: #{net_forward.1} parent=0 // pred_fallthru
    _
  // Predicated region
  $region26: #{net_forward.1} parent=0 // pred_check
    _
  $region27: #{net_forward.1} parent=0 // pred_check_branch
    %33 = sbr.rel (0) target = $region29
  $region28: #{net_forward.1} parent=0 // pred_region
    _
  $region29: #{net_forward.1} parent=0 // pred_fallthru
    _
  // Predicated region
  $region30: #{net_forward.1} parent=0 // pred_check
    _
  $region31: #{net_forward.1} parent=0 // pred_check_branch
    %35 = sbr.rel (0) target = $region33
  $region32: #{net_forward.1} parent=0 // pred_region
    _
  $region33: #{net_forward.1} parent=0 // pred_fallthru
    _
  // Predicated region
  $region34: #{net_forward.1} parent=0 // pred_check
    _
  $region35: #{net_forward.1} parent=0 // pred_check_branch
    %37 = sbr.rel (0) target = $region37
  $region36: #{net_forward.1} parent=0 // pred_region
    _
  $region37: #{net_forward.1} parent=0 // pred_fallthru
    _
  // Predicated region
  $region38: #{net_forward.1} parent=0 // pred_check
    _
  $region39: #{net_forward.1} parent=0 // pred_check_branch
    %39 = sbr.rel (0) target = $region41
  $region40: #{net_forward.1} parent=0 // pred_region
    _
  $region41: #{net_forward.1} parent=0 // pred_fallthru
    _
  // Predicated region
  $region42: #{net_forward.1} parent=0 // pred_check
    _
  $region43: #{net_forward.1} parent=0 // pred_check_branch
    %41 = sbr.rel (0) target = $region45
  $region44: #{net_forward.1} parent=0 // pred_region
    _
  $region45: #{net_forward.1} parent=0 // pred_fallthru
    _
  // Predicated region
  $region46: #{net_forward.1} parent=0 // pred_check
    _
  $region47: #{net_forward.1} parent=0 // pred_check_branch
    %43 = sbr.rel (0) target = $region49
  $region48: #{net_forward.1} parent=0 // pred_region
    _
  $region49: #{net_forward.1} parent=0 // pred_fallthru
    _
  // Predicated region
  $region50: #{net_forward.1} parent=0 // pred_check
    _
  $region51: #{net_forward.1} parent=0 // pred_check_branch
    %45 = sbr.rel (0) target = $region53
  $region52: #{net_forward.1} parent=0 // pred_region
    _
  $region53: #{net_forward.1} parent=0 // pred_fallthru
    _
  %v46 = vld [vmem:[%s0] sm:$0xff]
  %v47 = vld [vmem:[%s0 + $0x8] sm:$0xff]
  %v48 = vld [vmem:[%s0 + $0x10] sm:$0xff]
  %v49 = vld [vmem:[%s0 + $0x18] sm:$0xff]
  %v50 = vld [vmem:[%s0 + $0x20] sm:$0xff]
  %v51 = vld [vmem:[%s0 + $0x28] sm:$0xff]
  %v52 = vld [vmem:[%s0 + $0x30] sm:$0xff]
  %v53 = vld [vmem:[%s0 + $0x38] sm:$0xff]
  %v54 = vld [vmem:[%s0 + $0x40] sm:$0xff]
  %v55 = vld [vmem:[%s0 + $0x48] sm:$0xff]
  %v56 = vld [vmem:[%s0 + $0x50] sm:$0xff]
  %v57 = vld [vmem:[%s0 + $0x58] sm:$0xff]
  %v58 = vld [vmem:[%s0 + $0x60] sm:$0xff]
  %v59 = vld [vmem:[%s0 + $0x68] sm:$0xff]
  %v60 = vld [vmem:[%s0 + $0x70] sm:$0xff]
  %v61 = vld [vmem:[%s0 + $0x78] sm:$0xff]
  %v62 = vld [vmem:[%s0 + $0x80] sm:$0xff]
  %v63 = vld [vmem:[%s0 + $0x88] sm:$0xff]
  %v64 = vld [vmem:[%s0 + $0x90] sm:$0xff]
  %v65 = vld [vmem:[%s0 + $0x98] sm:$0xff]
  %v66 = vld [vmem:[%s0 + $0xa0] sm:$0xff]
  %v67 = vld [vmem:[%s0 + $0xa8] sm:$0xff]
  %v68 = vld [vmem:[%s0 + $0xb0] sm:$0x3f]
  %v69 = vld [vmem:[%s0 + $0xb8] sm:$0x3f]
  %v70 = vld [vmem:[%s0 + $0xc0] sm:$0x3f]
  %v71 = vld [vmem:[%s0 + $0xc8] sm:$0x3f]
  %v72 = vld [vmem:[%s0 + $0xd0] sm:$0x3f]
  %v73 = vld [vmem:[%s0 + $0xd8] sm:$0x3f]
  %v74 = vld [vmem:[%s0 + $0xe0] sm:$0x3f]
  %v75 = vld [vmem:[%s0 + $0xe8] sm:$0x3f]
  %v76 = vld [vmem:[%s0 + $0xf0] sm:$0x3f]
  %v77 = vld [vmem:[%s0 + $0xf8] sm:$0x3f]
  %v78 = vld [vmem:[%s0 + $0x100] sm:$0x3f]
  %v79 = vld [vmem:[%s0 + $0x108] sm:$0xff]
  %v80 = vld [vmem:[%s0 + $0x110] sm:$0xff]
  %v81 = vld [vmem:[%s0 + $0x118] sm:$0xff]
  %v82 = vld [vmem:[%s0 + $0x120] sm:$0xff]
  %v83 = vld [vmem:[%s0 + $0x128] sm:$0xff]
  %v84 = vld [vmem:[%s0 + $0x130] sm:$0xff]
  %v85 = vld [vmem:[%s0 + $0x138] sm:$0xff]
  %v86 = vld [vmem:[%s0 + $0x140] sm:$0xff]
  %v87 = vld [vmem:[%s0 + $0x148] sm:$0xff]
  %v88 = vld [vmem:[%s0 + $0x150] sm:$0xff]
  %v89 = vld [vmem:[%s0 + $0x158] sm:$0xff]
  %v90 = vld [vmem:[%s0 + $0x160] sm:$0xff]
  %v91 = vld [vmem:[%s0 + $0x168] sm:$0xff]
  %v92 = vld [vmem:[%s0 + $0x170] sm:$0xff]
  %v93 = vld [vmem:[%s0 + $0x178] sm:$0xff]
  %v94 = vld [vmem:[%s0 + $0x180] sm:$0xff]
  %v95 = vld [vmem:[%s0 + $0x188] sm:$0xff]
  %v96 = vld [vmem:[%s0 + $0x190] sm:$0xff]
  %v97 = vld [vmem:[%s0 + $0x198] sm:$0xff]
  %v98 = vld [vmem:[%s0 + $0x1a0] sm:$0xff]
  %v99 = vld [vmem:[%s0 + $0x1a8] sm:$0xff]
  %v100 = vld [vmem:[%s0 + $0x1b0] sm:$0xff]
  %v101 = vld [vmem:[%s0 + $0x1b8] sm:$0x3f]
  %v102 = vld [vmem:[%s0 + $0x1c0] sm:$0x3f]
  %v103 = vld [vmem:[%s0 + $0x1c8] sm:$0x3f]
  %v104 = vld [vmem:[%s0 + $0x1d0] sm:$0x3f]
  %v105 = vld [vmem:[%s0 + $0x1d8] sm:$0x3f]
  %v106 = vld [vmem:[%s0 + $0x1e0] sm:$0x3f]
  %v107 = vld [vmem:[%s0 + $0x1e8] sm:$0x3f]
  %v108 = vld [vmem:[%s0 + $0x1f0] sm:$0x3f]
  %v109 = vld [vmem:[%s0 + $0x1f8] sm:$0x3f]
  %v110 = vld [vmem:[%s0 + $0x200] sm:$0x3f]
  %v111 = vld [vmem:[%s0 + $0x208] sm:$0x3f]
  %v112 = vld [vmem:[%s0 + $0x210] sm:$0xff]
  %v113 = vld [vmem:[%s0 + $0x218] sm:$0xff]
  %v114 = vld [vmem:[%s0 + $0x220] sm:$0xff]
  %v115 = vld [vmem:[%s0 + $0x228] sm:$0xff]
  %v116 = vld [vmem:[%s0 + $0x230] sm:$0xff]
  %v117 = vld [vmem:[%s0 + $0x238] sm:$0xff]
  %v118 = vld [vmem:[%s0 + $0x240] sm:$0xff]
  %v119 = vld [vmem:[%s0 + $0x248] sm:$0xff]
  %v120 = vld [vmem:[%s0 + $0x250] sm:$0xff]
  %v121 = vld [vmem:[%s0 + $0x258] sm:$0xff]
  %v122 = vld [vmem:[%s0 + $0x260] sm:$0xff]
  %v123 = vld [vmem:[%s0 + $0x268] sm:$0xff]
  %v124 = vld [vmem:[%s0 + $0x270] sm:$0xff]
  %v125 = vld [vmem:[%s0 + $0x278] sm:$0xff]
  %v126 = vld [vmem:[%s0 + $0x280] sm:$0xff]
  %v127 = vld [vmem:[%s0 + $0x288] sm:$0xff]
  %v128 = vld [vmem:[%s0 + $0x290] sm:$0xff]
  %v129 = vld [vmem:[%s0 + $0x298] sm:$0xff]
  %v130 = vld [vmem:[%s0 + $0x2a0] sm:$0xff]
  %v131 = vld [vmem:[%s0 + $0x2a8] sm:$0xff]
  %v132 = vld [vmem:[%s0 + $0x2b0] sm:$0xff]
  %v133 = vld [vmem:[%s0 + $0x2b8] sm:$0xff]
  %v134 = vld [vmem:[%s0 + $0x2c0] sm:$0x3f]
  %v135 = vld [vmem:[%s0 + $0x2c8] sm:$0x3f]
  %v136 = vld [vmem:[%s0 + $0x2d0] sm:$0x3f]
  %v137 = vld [vmem:[%s0 + $0x2d8] sm:$0x3f]
  %v138 = vld [vmem:[%s0 + $0x2e0] sm:$0x3f]
  %v139 = vld [vmem:[%s0 + $0x2e8] sm:$0x3f]
  %v140 = vld [vmem:[%s0 + $0x2f0] sm:$0x3f]
  %v141 = vld [vmem:[%s0 + $0x2f8] sm:$0x3f]
  %v142 = vld [vmem:[%s0 + $0x300] sm:$0x3f]
  %v143 = vld [vmem:[%s0 + $0x308] sm:$0x3f]
  %v144 = vld [vmem:[%s0 + $0x310] sm:$0x3f]
  %v145 = vld [vmem:[%s0 + $0x318] sm:$0xff]
  %v146 = vld [vmem:[%s0 + $0x320] sm:$0xff]
  %v147 = vld [vmem:[%s0 + $0x328] sm:$0xff]
  %v148 = vld [vmem:[%s0 + $0x330] sm:$0xff]
  %v149 = vld [vmem:[%s0 + $0x338] sm:$0xff]
  %v150 = vld [vmem:[%s0 + $0x340] sm:$0xff]
  %v151 = vld [vmem:[%s0 + $0x348] sm:$0xff]
  %v152 = vld [vmem:[%s0 + $0x350] sm:$0xff]
  %v153 = vld [vmem:[%s0 + $0x358] sm:$0xff]
  %v154 = vld [vmem:[%s0 + $0x360] sm:$0xff]
  %v155 = vld [vmem:[%s0 + $0x368] sm:$0xff]
  %v156 = vld [vmem:[%s0 + $0x370] sm:$0xff]
  %v157 = vld [vmem:[%s0 + $0x378] sm:$0xff]
  %v158 = vld [vmem:[%s0 + $0x380] sm:$0xff]
  %v159 = vld [vmem:[%s0 + $0x388] sm:$0xff]
  %v160 = vld [vmem:[%s0 + $0x390] sm:$0xff]
  %v161 = vld [vmem:[%s0 + $0x398] sm:$0xff]
  %v162 = vld [vmem:[%s0 + $0x3a0] sm:$0xff]
  %v163 = vld [vmem:[%s0 + $0x3a8] sm:$0xff]
  %v164 = vld [vmem:[%s0 + $0x3b0] sm:$0xff]
  %v165 = vld [vmem:[%s0 + $0x3b8] sm:$0xff]
  %v166 = vld [vmem:[%s0 + $0x3c0] sm:$0xff]
  %v167 = vld [vmem:[%s0 + $0x3c8] sm:$0x3f]
  %v168 = vld [vmem:[%s0 + $0x3d0] sm:$0x3f]
  %v169 = vld [vmem:[%s0 + $0x3d8] sm:$0x3f]
  %v170 = vld [vmem:[%s0 + $0x3e0] sm:$0x3f]
  %v171 = vld [vmem:[%s0 + $0x3e8] sm:$0x3f]
  %v172 = vld [vmem:[%s0 + $0x3f0] sm:$0x3f]
  %v173 = vld [vmem:[%s0 + $0x3f8] sm:$0x3f]
  %v174 = vld [vmem:[%s0 + $0x400] sm:$0x3f]
  %v175 = vld [vmem:[%s0 + $0x408] sm:$0x3f]
  %v176 = vld [vmem:[%s0 + $0x410] sm:$0x3f]
  %v177 = vld [vmem:[%s0 + $0x418] sm:$0x3f]
  %v178 = vld [vmem:[%s0 + $0x420] sm:$0xff]
  %v179 = vld [vmem:[%s0 + $0x428] sm:$0xff]
  %v180 = vld [vmem:[%s0 + $0x430] sm:$0xff]
  %v181 = vld [vmem:[%s0 + $0x438] sm:$0xff]
  %v182 = vld [vmem:[%s0 + $0x440] sm:$0xff]
  %v183 = vld [vmem:[%s0 + $0x448] sm:$0xff]
  %v184 = vld [vmem:[%s0 + $0x450] sm:$0xff]
  %v185 = vld [vmem:[%s0 + $0x458] sm:$0xff]
  %v186 = vld [vmem:[%s0 + $0x460] sm:$0xff]
  %v187 = vld [vmem:[%s0 + $0x468] sm:$0xff]
  %v188 = vld [vmem:[%s0 + $0x470] sm:$0xff]
  %v189 = vld [vmem:[%s0 + $0x478] sm:$0xff]
  %v190 = vld [vmem:[%s0 + $0x480] sm:$0xff]
  %v191 = vld [vmem:[%s0 + $0x488] sm:$0xff]
  %v192 = vld [vmem:[%s0 + $0x490] sm:$0xff]
  %v193 = vld [vmem:[%s0 + $0x498] sm:$0xff]
  %v194 = vld [vmem:[%s0 + $0x4a0] sm:$0xff]
  %v195 = vld [vmem:[%s0 + $0x4a8] sm:$0xff]
  %v196 = vld [vmem:[%s0 + $0x4b0] sm:$0xff]
  %v197 = vld [vmem:[%s0 + $0x4b8] sm:$0xff]
  %v198 = vld [vmem:[%s0 + $0x4c0] sm:$0xff]
  %v199 = vld [vmem:[%s0 + $0x4c8] sm:$0xff]
  %v200 = vld [vmem:[%s0 + $0x4d0] sm:$0x3f]
  %v201 = vld [vmem:[%s0 + $0x4d8] sm:$0x3f]
  %v202 = vld [vmem:[%s0 + $0x4e0] sm:$0x3f]
  %v203 = vld [vmem:[%s0 + $0x4e8] sm:$0x3f]
  %v204 = vld [vmem:[%s0 + $0x4f0] sm:$0x3f]
  %v205 = vld [vmem:[%s0 + $0x4f8] sm:$0x3f]
  %v206 = vld [vmem:[%s0 + $0x500] sm:$0x3f]
  %v207 = vld [vmem:[%s0 + $0x508] sm:$0x3f]
  %v208 = vld [vmem:[%s0 + $0x510] sm:$0x3f]
  %v209 = vld [vmem:[%s0 + $0x518] sm:$0x3f]
  %v210 = vld [vmem:[%s0 + $0x520] sm:$0x3f]
  %v211 = vld [vmem:[%s0 + $0x528] sm:$0xff]
  %v212 = vld [vmem:[%s0 + $0x530] sm:$0xff]
  %v213 = vld [vmem:[%s0 + $0x538] sm:$0xff]
  %v214 = vld [vmem:[%s0 + $0x540] sm:$0xff]
  %v215 = vld [vmem:[%s0 + $0x548] sm:$0xff]
  %v216 = vld [vmem:[%s0 + $0x550] sm:$0xff]
  %v217 = vld [vmem:[%s0 + $0x558] sm:$0xff]
  %v218 = vld [vmem:[%s0 + $0x560] sm:$0xff]
  %v219 = vld [vmem:[%s0 + $0x568] sm:$0xff]
  %v220 = vld [vmem:[%s0 + $0x570] sm:$0xff]
  %v221 = vld [vmem:[%s0 + $0x578] sm:$0xff]
  %v222 = vld [vmem:[%s0 + $0x580] sm:$0xff]
  %v223 = vld [vmem:[%s0 + $0x588] sm:$0xff]
  %v224 = vld [vmem:[%s0 + $0x590] sm:$0xff]
  %v225 = vld [vmem:[%s0 + $0x598] sm:$0xff]
  %v226 = vld [vmem:[%s0 + $0x5a0] sm:$0xff]
  %v227 = vld [vmem:[%s0 + $0x5a8] sm:$0xff]
  %v228 = vld [vmem:[%s0 + $0x5b0] sm:$0xff]
  %v229 = vld [vmem:[%s0 + $0x5b8] sm:$0xff]
  %v230 = vld [vmem:[%s0 + $0x5c0] sm:$0xff]
  %v231 = vld [vmem:[%s0 + $0x5c8] sm:$0xff]
  %v232 = vld [vmem:[%s0 + $0x5d0] sm:$0xff]
  %v233 = vld [vmem:[%s0 + $0x5d8] sm:$0x3f]
  %v234 = vld [vmem:[%s0 + $0x5e0] sm:$0x3f]
  %v235 = vld [vmem:[%s0 + $0x5e8] sm:$0x3f]
  %v236 = vld [vmem:[%s0 + $0x5f0] sm:$0x3f]
  %v237 = vld [vmem:[%s0 + $0x5f8] sm:$0x3f]
  %v238 = vld [vmem:[%s0 + $0x600] sm:$0x3f]
  %v239 = vld [vmem:[%s0 + $0x608] sm:$0x3f]
  %v240 = vld [vmem:[%s0 + $0x610] sm:$0x3f]
  %v241 = vld [vmem:[%s0 + $0x618] sm:$0x3f]
  %v242 = vld [vmem:[%s0 + $0x620] sm:$0x3f]
  %v243 = vld [vmem:[%s0 + $0x628] sm:$0x3f]
  %v244 = vld [vmem:[%s0 + $0x630] sm:$0xff]
  %v245 = vld [vmem:[%s0 + $0x638] sm:$0xff]
  %v246 = vld [vmem:[%s0 + $0x640] sm:$0xff]
  %v247 = vld [vmem:[%s0 + $0x648] sm:$0xff]
  %v248 = vld [vmem:[%s0 + $0x650] sm:$0xff]
  %v249 = vld [vmem:[%s0 + $0x658] sm:$0xff]
  %v250 = vld [vmem:[%s0 + $0x660] sm:$0xff]
  %v251 = vld [vmem:[%s0 + $0x668] sm:$0xff]
  %v252 = vld [vmem:[%s0 + $0x670] sm:$0xff]
  %v253 = vld [vmem:[%s0 + $0x678] sm:$0xff]
  %v254 = vld [vmem:[%s0 + $0x680] sm:$0xff]
  %v255 = vld [vmem:[%s0 + $0x688] sm:$0xff]
  %v256 = vld [vmem:[%s0 + $0x690] sm:$0xff]
  %v257 = vld [vmem:[%s0 + $0x698] sm:$0xff]
  %v258 = vld [vmem:[%s0 + $0x6a0] sm:$0xff]
  %v259 = vld [vmem:[%s0 + $0x6a8] sm:$0xff]
  %v260 = vld [vmem:[%s0 + $0x6b0] sm:$0xff]
  %v261 = vld [vmem:[%s0 + $0x6b8] sm:$0xff]
  %v262 = vld [vmem:[%s0 + $0x6c0] sm:$0xff]
  %v263 = vld [vmem:[%s0 + $0x6c8] sm:$0xff]
  %v264 = vld [vmem:[%s0 + $0x6d0] sm:$0xff]
  %v265 = vld [vmem:[%s0 + $0x6d8] sm:$0xff]
  %v266 = vld [vmem:[%s0 + $0x6e0] sm:$0x3f]
  %v267 = vld [vmem:[%s0 + $0x6e8] sm:$0x3f]
  %v268 = vld [vmem:[%s0 + $0x6f0] sm:$0x3f]
  %v269 = vld [vmem:[%s0 + $0x6f8] sm:$0x3f]
  %v270 = vld [vmem:[%s0 + $0x700] sm:$0x3f]
  %v271 = vld [vmem:[%s0 + $0x708] sm:$0x3f]
  %v272 = vld [vmem:[%s0 + $0x710] sm:$0x3f]
  %v273 = vld [vmem:[%s0 + $0x718] sm:$0x3f]
  %v274 = vld [vmem:[%s0 + $0x720] sm:$0x3f]
  %v275 = vld [vmem:[%s0 + $0x728] sm:$0x3f]
  %v276 = vld [vmem:[%s0 + $0x730] sm:$0x3f]
  %v277 = vld [vmem:[%s0 + $0x738] sm:$0xff]
  %v278 = vld [vmem:[%s0 + $0x740] sm:$0xff]
  %v279 = vld [vmem:[%s0 + $0x748] sm:$0xff]
  %v280 = vld [vmem:[%s0 + $0x750] sm:$0xff]
  %v281 = vld [vmem:[%s0 + $0x758] sm:$0xff]
  %v282 = vld [vmem:[%s0 + $0x760] sm:$0xff]
  %v283 = vld [vmem:[%s0 + $0x768] sm:$0xff]
  %v284 = vld [vmem:[%s0 + $0x770] sm:$0xff]
  %v285 = vld [vmem:[%s0 + $0x778] sm:$0xff]
  %v286 = vld [vmem:[%s0 + $0x780] sm:$0xff]
  %v287 = vld [vmem:[%s0 + $0x788] sm:$0xff]
  %v288 = vld [vmem:[%s0 + $0x790] sm:$0xff]
  %v289 = vld [vmem:[%s0 + $0x798] sm:$0xff]
  %v290 = vld [vmem:[%s0 + $0x7a0] sm:$0xff]
  %v291 = vld [vmem:[%s0 + $0x7a8] sm:$0xff]
  %v292 = vld [vmem:[%s0 + $0x7b0] sm:$0xff]
  %v293 = vld [vmem:[%s0 + $0x7b8] sm:$0xff]
  %v294 = vld [vmem:[%s0 + $0x7c0] sm:$0xff]
  %v295 = vld [vmem:[%s0 + $0x7c8] sm:$0xff]
  %v296 = vld [vmem:[%s0 + $0x7d0] sm:$0xff]
  %v297 = vld [vmem:[%s0 + $0x7d8] sm:$0xff]
  %v298 = vld [vmem:[%s0 + $0x7e0] sm:$0xff]
  %v299 = vld [vmem:[%s0 + $0x7e8] sm:$0x3f]
  %v300 = vld [vmem:[%s0 + $0x7f0] sm:$0x3f]
  %v301 = vld [vmem:[%s0 + $0x7f8] sm:$0x3f]
  %v302 = vld [vmem:[%s0 + $0x800] sm:$0x3f]
  %v303 = vld [vmem:[%s0 + $0x808] sm:$0x3f]
  %v304 = vld [vmem:[%s0 + $0x810] sm:$0x3f]
  %v305 = vld [vmem:[%s0 + $0x818] sm:$0x3f]
  %v306 = vld [vmem:[%s0 + $0x820] sm:$0x3f]
  %v307 = vld [vmem:[%s0 + $0x828] sm:$0x3f]
  %v308 = vld [vmem:[%s0 + $0x830] sm:$0x3f]
  %v309 = vld [vmem:[%s0 + $0x838] sm:$0x3f]
  %v310 = vld [vmem:[%s1] sm:$0xff]
  %v311 = vld [vmem:[%s1 + $0x8] sm:$0xff]
  %v312 = vld [vmem:[%s1 + $0x10] sm:$0xff]
  %v313 = vld [vmem:[%s1 + $0x18] sm:$0xff]
  %v314 = vld [vmem:[%s1 + $0x20] sm:$0xff]
  %v315 = vld [vmem:[%s1 + $0x28] sm:$0xff]
  %v316 = vld [vmem:[%s1 + $0x30] sm:$0xff]
  %v317 = vld [vmem:[%s1 + $0x38] sm:$0xff]
  %v318 = vld [vmem:[%s1 + $0x40] sm:$0xff]
  %v319 = vld [vmem:[%s1 + $0x48] sm:$0xff]
  %v320 = vld [vmem:[%s1 + $0x50] sm:$0xff]
  %v321 = vld [vmem:[%s1 + $0x58] sm:$0xff]
  %v322 = vld [vmem:[%s1 + $0x60] sm:$0xff]
  %v323 = vld [vmem:[%s1 + $0x68] sm:$0xff]
  %v324 = vld [vmem:[%s1 + $0x70] sm:$0xff]
  %v325 = vld [vmem:[%s1 + $0x78] sm:$0xff]
  %v326 = vld [vmem:[%s1 + $0x80] sm:$0xff]
  %v327 = vld [vmem:[%s1 + $0x88] sm:$0xff]
  %v328 = vld [vmem:[%s1 + $0x90] sm:$0xff]
  %v329 = vld [vmem:[%s1 + $0x98] sm:$0xff]
  %v330 = vld [vmem:[%s1 + $0xa0] sm:$0xff]
  %v331 = vld [vmem:[%s1 + $0xa8] sm:$0xff]
  %v332 = vld [vmem:[%s1 + $0xb0] sm:$0x3f]
  %v333 = vld [vmem:[%s1 + $0xb8] sm:$0x3f]
  %v334 = vld [vmem:[%s1 + $0xc0] sm:$0x3f]
  %v335 = vld [vmem:[%s1 + $0xc8] sm:$0x3f]
  %v336 = vld [vmem:[%s1 + $0xd0] sm:$0x3f]
  %v337 = vld [vmem:[%s1 + $0xd8] sm:$0x3f]
  %v338 = vld [vmem:[%s1 + $0xe0] sm:$0x3f]
  %v339 = vld [vmem:[%s1 + $0xe8] sm:$0x3f]
  %v340 = vld [vmem:[%s1 + $0xf0] sm:$0x3f]
  %v341 = vld [vmem:[%s1 + $0xf8] sm:$0x3f]
  %v342 = vld [vmem:[%s1 + $0x100] sm:$0x3f]
  %v343 = vmul.f32 %v46, %v310
  %v344 = vmul.f32 %v47, %v311
  %v345 = vmul.f32 %v48, %v312
  %v346 = vmul.f32 %v49, %v313
  %v347 = vmul.f32 %v50, %v314
  %v348 = vmul.f32 %v51, %v315
  %v349 = vmul.f32 %v52, %v316
  %v350 = vmul.f32 %v53, %v317
  %v351 = vmul.f32 %v54, %v318
  %v352 = vmul.f32 %v55, %v319
  %v353 = vmul.f32 %v56, %v320
  %v354 = vmul.f32 %v57, %v321
  %v355 = vmul.f32 %v58, %v322
  %v356 = vmul.f32 %v59, %v323
  %v357 = vmul.f32 %v60, %v324
  %v358 = vmul.f32 %v61, %v325
  %v359 = vmul.f32 %v62, %v326
  %v360 = vmul.f32 %v63, %v327
  %v361 = vmul.f32 %v64, %v328
  %v362 = vmul.f32 %v65, %v329
  %v363 = vmul.f32 %v66, %v330
  %v364 = vmul.f32 %v67, %v331
  %v365 = vmul.f32 %v68, %v332
  %v366 = vmul.f32 %v69, %v333
  %v367 = vmul.f32 %v70, %v334
  %v368 = vmul.f32 %v71, %v335
  %v369 = vmul.f32 %v72, %v336
  %v370 = vmul.f32 %v73, %v337
  %v371 = vmul.f32 %v74, %v338
  %v372 = vmul.f32 %v75, %v339
  %v373 = vmul.f32 %v76, %v340
  %v374 = vmul.f32 %v77, %v341
  %v375 = vmul.f32 %v78, %v342
  %v376 = vmul.f32 %v79, %v310
  %v377 = vmul.f32 %v80, %v311
  %v378 = vmul.f32 %v81, %v312
  %v379 = vmul.f32 %v82, %v313
  %v380 = vmul.f32 %v83, %v314
  %v381 = vmul.f32 %v84, %v315
  %v382 = vmul.f32 %v85, %v316
  %v383 = vmul.f32 %v86, %v317
  %v384 = vmul.f32 %v87, %v318
  %v385 = vmul.f32 %v88, %v319
  %v386 = vmul.f32 %v89, %v320
  %v387 = vmul.f32 %v90, %v321
  %v388 = vmul.f32 %v91, %v322
  %v389 = vmul.f32 %v92, %v323
  %v390 = vmul.f32 %v93, %v324
  %v391 = vmul.f32 %v94, %v325
  %v392 = vmul.f32 %v95, %v326
  %v393 = vmul.f32 %v96, %v327
  %v394 = vmul.f32 %v97, %v328
  %v395 = vmul.f32 %v98, %v329
  %v396 = vmul.f32 %v99, %v330
  %v397 = vmul.f32 %v100, %v331
  %v398 = vmul.f32 %v101, %v332
  %v399 = vmul.f32 %v102, %v333
  %v400 = vmul.f32 %v103, %v334
  %v401 = vmul.f32 %v104, %v335
  %v402 = vmul.f32 %v105, %v336
  %v403 = vmul.f32 %v106, %v337
  %v404 = vmul.f32 %v107, %v338
  %v405 = vmul.f32 %v108, %v339
  %v406 = vmul.f32 %v109, %v340
  %v407 = vmul.f32 %v110, %v341
  %v408 = vmul.f32 %v111, %v342
  %v409 = vmul.f32 %v112, %v310
  %v410 = vmul.f32 %v113, %v311
  %v411 = vmul.f32 %v114, %v312
  %v412 = vmul.f32 %v115, %v313
  %v413 = vmul.f32 %v116, %v314
  %v414 = vmul.f32 %v117, %v315
  %v415 = vmul.f32 %v118, %v316
  %v416 = vmul.f32 %v119, %v317
  %v417 = vmul.f32 %v120, %v318
  %v418 = vmul.f32 %v121, %v319
  %v419 = vmul.f32 %v122, %v320
  %v420 = vmul.f32 %v123, %v321
  %v421 = vmul.f32 %v124, %v322
  %v422 = vmul.f32 %v125, %v323
  %v423 = vmul.f32 %v126, %v324
  %v424 = vmul.f32 %v127, %v325
  %v425 = vmul.f32 %v128, %v326
  %v426 = vmul.f32 %v129, %v327
  %v427 = vmul.f32 %v130, %v328
  %v428 = vmul.f32 %v131, %v329
  %v429 = vmul.f32 %v132, %v330
  %v430 = vmul.f32 %v133, %v331
  %v431 = vmul.f32 %v134, %v332
  %v432 = vmul.f32 %v135, %v333
  %v433 = vmul.f32 %v136, %v334
  %v434 = vmul.f32 %v137, %v335
  %v435 = vmul.f32 %v138, %v336
  %v436 = vmul.f32 %v139, %v337
  %v437 = vmul.f32 %v140, %v338
  %v438 = vmul.f32 %v141, %v339
  %v439 = vmul.f32 %v142, %v340
  %v440 = vmul.f32 %v143, %v341
  %v441 = vmul.f32 %v144, %v342
  %v442 = vmul.f32 %v145, %v310
  %v443 = vmul.f32 %v146, %v311
  %v444 = vmul.f32 %v147, %v312
  %v445 = vmul.f32 %v148, %v313
  %v446 = vmul.f32 %v149, %v314
  %v447 = vmul.f32 %v150, %v315
  %v448 = vmul.f32 %v151, %v316
  %v449 = vmul.f32 %v152, %v317
  %v450 = vmul.f32 %v153, %v318
  %v451 = vmul.f32 %v154, %v319
  %v452 = vmul.f32 %v155, %v320
  %v453 = vmul.f32 %v156, %v321
  %v454 = vmul.f32 %v157, %v322
  %v455 = vmul.f32 %v158, %v323
  %v456 = vmul.f32 %v159, %v324
  %v457 = vmul.f32 %v160, %v325
  %v458 = vmul.f32 %v161, %v326
  %v459 = vmul.f32 %v162, %v327
  %v460 = vmul.f32 %v163, %v328
  %v461 = vmul.f32 %v164, %v329
  %v462 = vmul.f32 %v165, %v330
  %v463 = vmul.f32 %v166, %v331
  %v464 = vmul.f32 %v167, %v332
  %v465 = vmul.f32 %v168, %v333
  %v466 = vmul.f32 %v169, %v334
  %v467 = vmul.f32 %v170, %v335
  %v468 = vmul.f32 %v171, %v336
  %v469 = vmul.f32 %v172, %v337
  %v470 = vmul.f32 %v173, %v338
  %v471 = vmul.f32 %v174, %v339
  %v472 = vmul.f32 %v175, %v340
  %v473 = vmul.f32 %v176, %v341
  %v474 = vmul.f32 %v177, %v342
  %v475 = vmul.f32 %v178, %v310
  %v476 = vmul.f32 %v179, %v311
  %v477 = vmul.f32 %v180, %v312
  %v478 = vmul.f32 %v181, %v313
  %v479 = vmul.f32 %v182, %v314
  %v480 = vmul.f32 %v183, %v315
  %v481 = vmul.f32 %v184, %v316
  %v482 = vmul.f32 %v185, %v317
  %v483 = vmul.f32 %v186, %v318
  %v484 = vmul.f32 %v187, %v319
  %v485 = vmul.f32 %v188, %v320
  %v486 = vmul.f32 %v189, %v321
  %v487 = vmul.f32 %v190, %v322
  %v488 = vmul.f32 %v191, %v323
  %v489 = vmul.f32 %v192, %v324
  %v490 = vmul.f32 %v193, %v325
  %v491 = vmul.f32 %v194, %v326
  %v492 = vmul.f32 %v195, %v327
  %v493 = vmul.f32 %v196, %v328
  %v494 = vmul.f32 %v197, %v329
  %v495 = vmul.f32 %v198, %v330
  %v496 = vmul.f32 %v199, %v331
  %v497 = vmul.f32 %v200, %v332
  %v498 = vmul.f32 %v201, %v333
  %v499 = vmul.f32 %v202, %v334
  %v500 = vmul.f32 %v203, %v335
  %v501 = vmul.f32 %v204, %v336
  %v502 = vmul.f32 %v205, %v337
  %v503 = vmul.f32 %v206, %v338
  %v504 = vmul.f32 %v207, %v339
  %v505 = vmul.f32 %v208, %v340
  %v506 = vmul.f32 %v209, %v341
  %v507 = vmul.f32 %v210, %v342
  %v508 = vmul.f32 %v211, %v310
  %v509 = vmul.f32 %v212, %v311
  %v510 = vmul.f32 %v213, %v312
  %v511 = vmul.f32 %v214, %v313
  %v512 = vmul.f32 %v215, %v314
  %v513 = vmul.f32 %v216, %v315
  %v514 = vmul.f32 %v217, %v316
  %v515 = vmul.f32 %v218, %v317
  %v516 = vmul.f32 %v219, %v318
  %v517 = vmul.f32 %v220, %v319
  %v518 = vmul.f32 %v221, %v320
  %v519 = vmul.f32 %v222, %v321
  %v520 = vmul.f32 %v223, %v322
  %v521 = vmul.f32 %v224, %v323
  %v522 = vmul.f32 %v225, %v324
  %v523 = vmul.f32 %v226, %v325
  %v524 = vmul.f32 %v227, %v326
  %v525 = vmul.f32 %v228, %v327
  %v526 = vmul.f32 %v229, %v328
  %v527 = vmul.f32 %v230, %v329
  %v528 = vmul.f32 %v231, %v330
  %v529 = vmul.f32 %v232, %v331
  %v530 = vmul.f32 %v233, %v332
  %v531 = vmul.f32 %v234, %v333
  %v532 = vmul.f32 %v235, %v334
  %v533 = vmul.f32 %v236, %v335
  %v534 = vmul.f32 %v237, %v336
  %v535 = vmul.f32 %v238, %v337
  %v536 = vmul.f32 %v239, %v338
  %v537 = vmul.f32 %v240, %v339
  %v538 = vmul.f32 %v241, %v340
  %v539 = vmul.f32 %v242, %v341
  %v540 = vmul.f32 %v243, %v342
  %v541 = vmul.f32 %v244, %v310
  %v542 = vmul.f32 %v245, %v311
  %v543 = vmul.f32 %v246, %v312
  %v544 = vmul.f32 %v247, %v313
  %v545 = vmul.f32 %v248, %v314
  %v546 = vmul.f32 %v249, %v315
  %v547 = vmul.f32 %v250, %v316
  %v548 = vmul.f32 %v251, %v317
  %v549 = vmul.f32 %v252, %v318
  %v550 = vmul.f32 %v253, %v319
  %v551 = vmul.f32 %v254, %v320
  %v552 = vmul.f32 %v255, %v321
  %v553 = vmul.f32 %v256, %v322
  %v554 = vmul.f32 %v257, %v323
  %v555 = vmul.f32 %v258, %v324
  %v556 = vmul.f32 %v259, %v325
  %v557 = vmul.f32 %v260, %v326
  %v558 = vmul.f32 %v261, %v327
  %v559 = vmul.f32 %v262, %v328
  %v560 = vmul.f32 %v263, %v329
  %v561 = vmul.f32 %v264, %v330
  %v562 = vmul.f32 %v265, %v331
  %v563 = vmul.f32 %v266, %v332
  %v564 = vmul.f32 %v267, %v333
  %v565 = vmul.f32 %v268, %v334
  %v566 = vmul.f32 %v269, %v335
  %v567 = vmul.f32 %v270, %v336
  %v568 = vmul.f32 %v271, %v337
  %v569 = vmul.f32 %v272, %v338
  %v570 = vmul.f32 %v273, %v339
  %v571 = vmul.f32 %v274, %v340
  %v572 = vmul.f32 %v275, %v341
  %v573 = vmul.f32 %v276, %v342
  %v574 = vmul.f32 %v277, %v310
  %v575 = vmul.f32 %v278, %v311
  %v576 = vmul.f32 %v279, %v312
  %v577 = vmul.f32 %v280, %v313
  %v578 = vmul.f32 %v281, %v314
  %v579 = vmul.f32 %v282, %v315
  %v580 = vmul.f32 %v283, %v316
  %v581 = vmul.f32 %v284, %v317
  %v582 = vmul.f32 %v285, %v318
  %v583 = vmul.f32 %v286, %v319
  %v584 = vmul.f32 %v287, %v320
  %v585 = vmul.f32 %v288, %v321
  %v586 = vmul.f32 %v289, %v322
  %v587 = vmul.f32 %v290, %v323
  %v588 = vmul.f32 %v291, %v324
  %v589 = vmul.f32 %v292, %v325
  %v590 = vmul.f32 %v293, %v326
  %v591 = vmul.f32 %v294, %v327
  %v592 = vmul.f32 %v295, %v328
  %v593 = vmul.f32 %v296, %v329
  %v594 = vmul.f32 %v297, %v330
  %v595 = vmul.f32 %v298, %v331
  %v596 = vmul.f32 %v299, %v332
  %v597 = vmul.f32 %v300, %v333
  %v598 = vmul.f32 %v301, %v334
  %v599 = vmul.f32 %v302, %v335
  %v600 = vmul.f32 %v303, %v336
  %v601 = vmul.f32 %v304, %v337
  %v602 = vmul.f32 %v305, %v338
  %v603 = vmul.f32 %v306, %v339
  %v604 = vmul.f32 %v307, %v340
  %v605 = vmul.f32 %v308, %v341
  %v606 = vmul.f32 %v309, %v342
  %v607 = vadd.f32 %v343, %v344
  %v608 = vadd.f32 %v607, %v345
  %v609 = vadd.f32 %v608, %v346
  %v610 = vadd.f32 %v609, %v347
  %v611 = vadd.f32 %v610, %v348
  %v612 = vadd.f32 %v611, %v349
  %v613 = vadd.f32 %v612, %v350
  %v614 = vadd.f32 %v613, %v351
  %v615 = vadd.f32 %v614, %v352
  %vm616 = vcmask 982016
  %v617 = vsel %vm616, %v353, 0.0
  %v618 = vadd.f32 %v615, %v617
  %619 = vadd.xlane.f32.xlu0 %v618
  %v620 = vpop.xlane.xlu0 %619
  %v621 = vadd.f32 %v354, %v355
  %v622 = vadd.f32 %v621, %v356
  %v623 = vadd.f32 %v622, %v357
  %v624 = vadd.f32 %v623, %v358
  %v625 = vadd.f32 %v624, %v359
  %v626 = vadd.f32 %v625, %v360
  %v627 = vadd.f32 %v626, %v361
  %v628 = vadd.f32 %v627, %v362
  %v629 = vadd.f32 %v628, %v363
  %v630 = vsel %vm616, %v364, 0.0
  %v631 = vadd.f32 %v629, %v630
  %632 = vadd.xlane.f32.xlu0 %v631
  %v633 = vpop.xlane.xlu0 %632
  %vm634 = vcmask 1045504
  %v635 = vsel %vm634, %v365, 0.0
  %v636 = vsel %vm634, %v366, 0.0
  %v637 = vadd.f32 %v635, %v636
  %v638 = vsel %vm634, %v367, 0.0
  %v639 = vadd.f32 %v637, %v638
  %v640 = vsel %vm634, %v368, 0.0
  %v641 = vadd.f32 %v639, %v640
  %v642 = vsel %vm634, %v369, 0.0
  %v643 = vadd.f32 %v641, %v642
  %v644 = vsel %vm634, %v370, 0.0
  %v645 = vadd.f32 %v643, %v644
  %v646 = vsel %vm634, %v371, 0.0
  %v647 = vadd.f32 %v645, %v646
  %v648 = vsel %vm634, %v372, 0.0
  %v649 = vadd.f32 %v647, %v648
  %v650 = vsel %vm634, %v373, 0.0
  %v651 = vadd.f32 %v649, %v650
  %v652 = vsel %vm634, %v374, 0.0
  %v653 = vadd.f32 %v651, %v652
  %vm654 = vcmask 979968
  %v655 = vsel %vm654, %v375, 0.0
  %v656 = vadd.f32 %v653, %v655
  %657 = vadd.xlane.f32.xlu0 %v656
  %v658 = vpop.xlane.xlu0 %657
  %v659 = vadd.f32 %v376, %v377
  %v660 = vadd.f32 %v659, %v378
  %v661 = vadd.f32 %v660, %v379
  %v662 = vadd.f32 %v661, %v380
  %v663 = vadd.f32 %v662, %v381
  %v664 = vadd.f32 %v663, %v382
  %v665 = vadd.f32 %v664, %v383
  %v666 = vadd.f32 %v665, %v384
  %v667 = vadd.f32 %v666, %v385
  %v668 = vsel %vm616, %v386, 0.0
  %v669 = vadd.f32 %v667, %v668
  %670 = vadd.xlane.f32.xlu0 %v669
  %v671 = vpop.xlane.xlu0 %670
  %v672 = vadd.f32 %v387, %v388
  %v673 = vadd.f32 %v672, %v389
  %v674 = vadd.f32 %v673, %v390
  %v675 = vadd.f32 %v674, %v391
  %v676 = vadd.f32 %v675, %v392
  %v677 = vadd.f32 %v676, %v393
  %v678 = vadd.f32 %v677, %v394
  %v679 = vadd.f32 %v678, %v395
  %v680 = vadd.f32 %v679, %v396
  %v681 = vsel %vm616, %v397, 0.0
  %v682 = vadd.f32 %v680, %v681
  %683 = vadd.xlane.f32.xlu0 %v682
  %v684 = vpop.xlane.xlu0 %683
  %v685 = vsel %vm634, %v398, 0.0
  %v686 = vsel %vm634, %v399, 0.0
  %v687 = vadd.f32 %v685, %v686
  %v688 = vsel %vm634, %v400, 0.0
  %v689 = vadd.f32 %v687, %v688
  %v690 = vsel %vm634, %v401, 0.0
  %v691 = vadd.f32 %v689, %v690
  %v692 = vsel %vm634, %v402, 0.0
  %v693 = vadd.f32 %v691, %v692
  %v694 = vsel %vm634, %v403, 0.0
  %v695 = vadd.f32 %v693, %v694
  %v696 = vsel %vm634, %v404, 0.0
  %v697 = vadd.f32 %v695, %v696
  %v698 = vsel %vm634, %v405, 0.0
  %v699 = vadd.f32 %v697, %v698
  %v700 = vsel %vm634, %v406, 0.0
  %v701 = vadd.f32 %v699, %v700
  %v702 = vsel %vm634, %v407, 0.0
  %v703 = vadd.f32 %v701, %v702
  %v704 = vsel %vm654, %v408, 0.0
  %v705 = vadd.f32 %v703, %v704
  %706 = vadd.xlane.f32.xlu0 %v705
  %v707 = vpop.xlane.xlu0 %706
  %v708 = vadd.f32 %v409, %v410
  %v709 = vadd.f32 %v708, %v411
  %v710 = vadd.f32 %v709, %v412
  %v711 = vadd.f32 %v710, %v413
  %v712 = vadd.f32 %v711, %v414
  %v713 = vadd.f32 %v712, %v415
  %v714 = vadd.f32 %v713, %v416
  %v715 = vadd.f32 %v714, %v417
  %v716 = vadd.f32 %v715, %v418
  %v717 = vsel %vm616, %v419, 0.0
  %v718 = vadd.f32 %v716, %v717
  %719 = vadd.xlane.f32.xlu0 %v718
  %v720 = vpop.xlane.xlu0 %719
  %v721 = vadd.f32 %v420, %v421
  %v722 = vadd.f32 %v721, %v422
  %v723 = vadd.f32 %v722, %v423
  %v724 = vadd.f32 %v723, %v424
  %v725 = vadd.f32 %v724, %v425
  %v726 = vadd.f32 %v725, %v426
  %v727 = vadd.f32 %v726, %v427
  %v728 = vadd.f32 %v727, %v428
  %v729 = vadd.f32 %v728, %v429
  %v730 = vsel %vm616, %v430, 0.0
  %v731 = vadd.f32 %v729, %v730
  %732 = vadd.xlane.f32.xlu0 %v731
  %v733 = vpop.xlane.xlu0 %732
  %v734 = vsel %vm634, %v431, 0.0
  %v735 = vsel %vm634, %v432, 0.0
  %v736 = vadd.f32 %v734, %v735
  %v737 = vsel %vm634, %v433, 0.0
  %v738 = vadd.f32 %v736, %v737
  %v739 = vsel %vm634, %v434, 0.0
  %v740 = vadd.f32 %v738, %v739
  %v741 = vsel %vm634, %v435, 0.0
  %v742 = vadd.f32 %v740, %v741
  %v743 = vsel %vm634, %v436, 0.0
  %v744 = vadd.f32 %v742, %v743
  %v745 = vsel %vm634, %v437, 0.0
  %v746 = vadd.f32 %v744, %v745
  %v747 = vsel %vm634, %v438, 0.0
  %v748 = vadd.f32 %v746, %v747
  %v749 = vsel %vm634, %v439, 0.0
  %v750 = vadd.f32 %v748, %v749
  %v751 = vsel %vm634, %v440, 0.0
  %v752 = vadd.f32 %v750, %v751
  %v753 = vsel %vm654, %v441, 0.0
  %v754 = vadd.f32 %v752, %v753
  %755 = vadd.xlane.f32.xlu0 %v754
  %v756 = vpop.xlane.xlu0 %755
  %v757 = vadd.f32 %v442, %v443
  %v758 = vadd.f32 %v757, %v444
  %v759 = vadd.f32 %v758, %v445
  %v760 = vadd.f32 %v759, %v446
  %v761 = vadd.f32 %v760, %v447
  %v762 = vadd.f32 %v761, %v448
  %v763 = vadd.f32 %v762, %v449
  %v764 = vadd.f32 %v763, %v450
  %v765 = vadd.f32 %v764, %v451
  %v766 = vsel %vm616, %v452, 0.0
  %v767 = vadd.f32 %v765, %v766
  %768 = vadd.xlane.f32.xlu0 %v767
  %v769 = vpop.xlane.xlu0 %768
  %v770 = vadd.f32 %v453, %v454
  %v771 = vadd.f32 %v770, %v455
  %v772 = vadd.f32 %v771, %v456
  %v773 = vadd.f32 %v772, %v457
  %v774 = vadd.f32 %v773, %v458
  %v775 = vadd.f32 %v774, %v459
  %v776 = vadd.f32 %v775, %v460
  %v777 = vadd.f32 %v776, %v461
  %v778 = vadd.f32 %v777, %v462
  %v779 = vsel %vm616, %v463, 0.0
  %v780 = vadd.f32 %v778, %v779
  %781 = vadd.xlane.f32.xlu0 %v780
  %v782 = vpop.xlane.xlu0 %781
  %v783 = vsel %vm634, %v464, 0.0
  %v784 = vsel %vm634, %v465, 0.0
  %v785 = vadd.f32 %v783, %v784
  %v786 = vsel %vm634, %v466, 0.0
  %v787 = vadd.f32 %v785, %v786
  %v788 = vsel %vm634, %v467, 0.0
  %v789 = vadd.f32 %v787, %v788
  %v790 = vsel %vm634, %v468, 0.0
  %v791 = vadd.f32 %v789, %v790
  %v792 = vsel %vm634, %v469, 0.0
  %v793 = vadd.f32 %v791, %v792
  %v794 = vsel %vm634, %v470, 0.0
  %v795 = vadd.f32 %v793, %v794
  %v796 = vsel %vm634, %v471, 0.0
  %v797 = vadd.f32 %v795, %v796
  %v798 = vsel %vm634, %v472, 0.0
  %v799 = vadd.f32 %v797, %v798
  %v800 = vsel %vm634, %v473, 0.0
  %v801 = vadd.f32 %v799, %v800
  %v802 = vsel %vm654, %v474, 0.0
  %v803 = vadd.f32 %v801, %v802
  %804 = vadd.xlane.f32.xlu0 %v803
  %v805 = vpop.xlane.xlu0 %804
  %v806 = vadd.f32 %v475, %v476
  %v807 = vadd.f32 %v806, %v477
  %v808 = vadd.f32 %v807, %v478
  %v809 = vadd.f32 %v808, %v479
  %v810 = vadd.f32 %v809, %v480
  %v811 = vadd.f32 %v810, %v481
  %v812 = vadd.f32 %v811, %v482
  %v813 = vadd.f32 %v812, %v483
  %v814 = vadd.f32 %v813, %v484
  %v815 = vsel %vm616, %v485, 0.0
  %v816 = vadd.f32 %v814, %v815
  %817 = vadd.xlane.f32.xlu0 %v816
  %v818 = vpop.xlane.xlu0 %817
  %v819 = vadd.f32 %v486, %v487
  %v820 = vadd.f32 %v819, %v488
  %v821 = vadd.f32 %v820, %v489
  %v822 = vadd.f32 %v821, %v490
  %v823 = vadd.f32 %v822, %v491
  %v824 = vadd.f32 %v823, %v492
  %v825 = vadd.f32 %v824, %v493
  %v826 = vadd.f32 %v825, %v494
  %v827 = vadd.f32 %v826, %v495
  %v828 = vsel %vm616, %v496, 0.0
  %v829 = vadd.f32 %v827, %v828
  %830 = vadd.xlane.f32.xlu0 %v829
  %v831 = vpop.xlane.xlu0 %830
  %v832 = vsel %vm634, %v497, 0.0
  %v833 = vsel %vm634, %v498, 0.0
  %v834 = vadd.f32 %v832, %v833
  %v835 = vsel %vm634, %v499, 0.0
  %v836 = vadd.f32 %v834, %v835
  %v837 = vsel %vm634, %v500, 0.0
  %v838 = vadd.f32 %v836, %v837
  %v839 = vsel %vm634, %v501, 0.0
  %v840 = vadd.f32 %v838, %v839
  %v841 = vsel %vm634, %v502, 0.0
  %v842 = vadd.f32 %v840, %v841
  %v843 = vsel %vm634, %v503, 0.0
  %v844 = vadd.f32 %v842, %v843
  %v845 = vsel %vm634, %v504, 0.0
  %v846 = vadd.f32 %v844, %v845
  %v847 = vsel %vm634, %v505, 0.0
  %v848 = vadd.f32 %v846, %v847
  %v849 = vsel %vm634, %v506, 0.0
  %v850 = vadd.f32 %v848, %v849
  %v851 = vsel %vm654, %v507, 0.0
  %v852 = vadd.f32 %v850, %v851
  %853 = vadd.xlane.f32.xlu0 %v852
  %v854 = vpop.xlane.xlu0 %853
  %v855 = vadd.f32 %v508, %v509
  %v856 = vadd.f32 %v855, %v510
  %v857 = vadd.f32 %v856, %v511
  %v858 = vadd.f32 %v857, %v512
  %v859 = vadd.f32 %v858, %v513
  %v860 = vadd.f32 %v859, %v514
  %v861 = vadd.f32 %v860, %v515
  %v862 = vadd.f32 %v861, %v516
  %v863 = vadd.f32 %v862, %v517
  %v864 = vsel %vm616, %v518, 0.0
  %v865 = vadd.f32 %v863, %v864
  %866 = vadd.xlane.f32.xlu0 %v865
  %v867 = vpop.xlane.xlu0 %866
  %v868 = vadd.f32 %v519, %v520
  %v869 = vadd.f32 %v868, %v521
  %v870 = vadd.f32 %v869, %v522
  %v871 = vadd.f32 %v870, %v523
  %v872 = vadd.f32 %v871, %v524
  %v873 = vadd.f32 %v872, %v525
  %v874 = vadd.f32 %v873, %v526
  %v875 = vadd.f32 %v874, %v527
  %v876 = vadd.f32 %v875, %v528
  %v877 = vsel %vm616, %v529, 0.0
  %v878 = vadd.f32 %v876, %v877
  %879 = vadd.xlane.f32.xlu0 %v878
  %v880 = vpop.xlane.xlu0 %879
  %v881 = vsel %vm634, %v530, 0.0
  %v882 = vsel %vm634, %v531, 0.0
  %v883 = vadd.f32 %v881, %v882
  %v884 = vsel %vm634, %v532, 0.0
  %v885 = vadd.f32 %v883, %v884
  %v886 = vsel %vm634, %v533, 0.0
  %v887 = vadd.f32 %v885, %v886
  %v888 = vsel %vm634, %v534, 0.0
  %v889 = vadd.f32 %v887, %v888
  %v890 = vsel %vm634, %v535, 0.0
  %v891 = vadd.f32 %v889, %v890
  %v892 = vsel %vm634, %v536, 0.0
  %v893 = vadd.f32 %v891, %v892
  %v894 = vsel %vm634, %v537, 0.0
  %v895 = vadd.f32 %v893, %v894
  %v896 = vsel %vm634, %v538, 0.0
  %v897 = vadd.f32 %v895, %v896
  %v898 = vsel %vm634, %v539, 0.0
  %v899 = vadd.f32 %v897, %v898
  %v900 = vsel %vm654, %v540, 0.0
  %v901 = vadd.f32 %v899, %v900
  %902 = vadd.xlane.f32.xlu0 %v901
  %v903 = vpop.xlane.xlu0 %902
  %v904 = vadd.f32 %v541, %v542
  %v905 = vadd.f32 %v904, %v543
  %v906 = vadd.f32 %v905, %v544
  %v907 = vadd.f32 %v906, %v545
  %v908 = vadd.f32 %v907, %v546
  %v909 = vadd.f32 %v908, %v547
  %v910 = vadd.f32 %v909, %v548
  %v911 = vadd.f32 %v910, %v549
  %v912 = vadd.f32 %v911, %v550
  %v913 = vsel %vm616, %v551, 0.0
  %v914 = vadd.f32 %v912, %v913
  %915 = vadd.xlane.f32.xlu0 %v914
  %v916 = vpop.xlane.xlu0 %915
  %v917 = vadd.f32 %v552, %v553
  %v918 = vadd.f32 %v917, %v554
  %v919 = vadd.f32 %v918, %v555
  %v920 = vadd.f32 %v919, %v556
  %v921 = vadd.f32 %v920, %v557
  %v922 = vadd.f32 %v921, %v558
  %v923 = vadd.f32 %v922, %v559
  %v924 = vadd.f32 %v923, %v560
  %v925 = vadd.f32 %v924, %v561
  %v926 = vsel %vm616, %v562, 0.0
  %v927 = vadd.f32 %v925, %v926
  %928 = vadd.xlane.f32.xlu0 %v927
  %v929 = vpop.xlane.xlu0 %928
  %v930 = vsel %vm634, %v563, 0.0
  %v931 = vsel %vm634, %v564, 0.0
  %v932 = vadd.f32 %v930, %v931
  %v933 = vsel %vm634, %v565, 0.0
  %v934 = vadd.f32 %v932, %v933
  %v935 = vsel %vm634, %v566, 0.0
  %v936 = vadd.f32 %v934, %v935
  %v937 = vsel %vm634, %v567, 0.0
  %v938 = vadd.f32 %v936, %v937
  %v939 = vsel %vm634, %v568, 0.0
  %v940 = vadd.f32 %v938, %v939
  %v941 = vsel %vm634, %v569, 0.0
  %v942 = vadd.f32 %v940, %v941
  %v943 = vsel %vm634, %v570, 0.0
  %v944 = vadd.f32 %v942, %v943
  %v945 = vsel %vm634, %v571, 0.0
  %v946 = vadd.f32 %v944, %v945
  %v947 = vsel %vm634, %v572, 0.0
  %v948 = vadd.f32 %v946, %v947
  %v949 = vsel %vm654, %v573, 0.0
  %v950 = vadd.f32 %v948, %v949
  %951 = vadd.xlane.f32.xlu0 %v950
  %v952 = vpop.xlane.xlu0 %951
  %v953 = vadd.f32 %v574, %v575
  %v954 = vadd.f32 %v953, %v576
  %v955 = vadd.f32 %v954, %v577
  %v956 = vadd.f32 %v955, %v578
  %v957 = vadd.f32 %v956, %v579
  %v958 = vadd.f32 %v957, %v580
  %v959 = vadd.f32 %v958, %v581
  %v960 = vadd.f32 %v959, %v582
  %v961 = vadd.f32 %v960, %v583
  %v962 = vsel %vm616, %v584, 0.0
  %v963 = vadd.f32 %v961, %v962
  %964 = vadd.xlane.f32.xlu0 %v963
  %v965 = vpop.xlane.xlu0 %964
  %v966 = vadd.f32 %v585, %v586
  %v967 = vadd.f32 %v966, %v587
  %v968 = vadd.f32 %v967, %v588
  %v969 = vadd.f32 %v968, %v589
  %v970 = vadd.f32 %v969, %v590
  %v971 = vadd.f32 %v970, %v591
  %v972 = vadd.f32 %v971, %v592
  %v973 = vadd.f32 %v972, %v593
  %v974 = vadd.f32 %v973, %v594
  %v975 = vsel %vm616, %v595, 0.0
  %v976 = vadd.f32 %v974, %v975
  %977 = vadd.xlane.f32.xlu0 %v976
  %v978 = vpop.xlane.xlu0 %977
  %v979 = vsel %vm634, %v596, 0.0
  %v980 = vsel %vm634, %v597, 0.0
  %v981 = vadd.f32 %v979, %v980
  %v982 = vsel %vm634, %v598, 0.0
  %v983 = vadd.f32 %v981, %v982
  %v984 = vsel %vm634, %v599, 0.0
  %v985 = vadd.f32 %v983, %v984
  %v986 = vsel %vm634, %v600, 0.0
  %v987 = vadd.f32 %v985, %v986
  %v988 = vsel %vm634, %v601, 0.0
  %v989 = vadd.f32 %v987, %v988
  %v990 = vsel %vm634, %v602, 0.0
  %v991 = vadd.f32 %v989, %v990
  %v992 = vsel %vm634, %v603, 0.0
  %v993 = vadd.f32 %v991, %v992
  %v994 = vsel %vm634, %v604, 0.0
  %v995 = vadd.f32 %v993, %v994
  %v996 = vsel %vm634, %v605, 0.0
  %v997 = vadd.f32 %v995, %v996
  %v998 = vsel %vm654, %v606, 0.0
  %v999 = vadd.f32 %v997, %v998
  %1000 = vadd.xlane.f32.xlu0 %v999
  %v1001 = vpop.xlane.xlu0 %1000
  %v1002 = vld [vmem:[%s2] sm:$0x1]
  %v1004 = vlaneseq
  %v1005 = vshrl.u32 %v1004, 7
  %v1006 = vsub.s32 0, %v1005
  %v1007 = vrot.slane %v1002, %v1006
  %1009 = vbcast.lane.b32.xlu0 %v1007, 256
  %v1010 = vpop.permute.xlu0 %1009
  %s1012 = sor.u32 256, 8
  %1013 = vbcast.lane.b32.xlu0 %v1007, %s1012
  %v1014 = vpop.permute.xlu0 %1013
  %s1016 = sor.u32 256, 16
  %1017 = vbcast.lane.b32.xlu0 %v1007, %s1016
  %v1018 = vpop.permute.xlu0 %1017
  %v1022 = vadd.f32 %v620, %v1010
  %v1023 = vadd.f32 %v633, %v1014
  %v1024 = vadd.f32 %v658, %v1018
  %v1025 = vadd.f32 %v671, %v1010
  %v1026 = vadd.f32 %v684, %v1014
  %v1027 = vadd.f32 %v707, %v1018
  %v1028 = vadd.f32 %v720, %v1010
  %v1029 = vadd.f32 %v733, %v1014
  %v1030 = vadd.f32 %v756, %v1018
  %v1031 = vadd.f32 %v769, %v1010
  %v1032 = vadd.f32 %v782, %v1014
  %v1033 = vadd.f32 %v805, %v1018
  %v1034 = vadd.f32 %v818, %v1010
  %v1035 = vadd.f32 %v831, %v1014
  %v1036 = vadd.f32 %v854, %v1018
  %v1037 = vadd.f32 %v867, %v1010
  %v1038 = vadd.f32 %v880, %v1014
  %v1039 = vadd.f32 %v903, %v1018
  %v1040 = vadd.f32 %v916, %v1010
  %v1041 = vadd.f32 %v929, %v1014
  %v1042 = vadd.f32 %v952, %v1018
  %v1043 = vadd.f32 %v965, %v1010
  %v1044 = vadd.f32 %v978, %v1014
  %v1045 = vadd.f32 %v1001, %v1018
  %v1046 = vld [vmem:[%s3] sm:$0xff]
  %v1047 = vld [vmem:[%s3 + $0x8] sm:$0xff]
  %v1048 = vld [vmem:[%s3 + $0x10] sm:$0xff]
  %v1049 = vld [vmem:[%s3 + $0x18] sm:$0xff]
  %v1050 = vld [vmem:[%s3 + $0x20] sm:$0xff]
  %v1051 = vld [vmem:[%s3 + $0x28] sm:$0xff]
  %v1052 = vld [vmem:[%s3 + $0x30] sm:$0xff]
  %v1053 = vld [vmem:[%s3 + $0x38] sm:$0xff]
  %v1054 = vld [vmem:[%s3 + $0x40] sm:$0xff]
  %v1055 = vld [vmem:[%s3 + $0x48] sm:$0xff]
  %v1056 = vld [vmem:[%s3 + $0x50] sm:$0xff]
  %v1057 = vld [vmem:[%s3 + $0x58] sm:$0xff]
  %v1058 = vld [vmem:[%s3 + $0x60] sm:$0xff]
  %v1059 = vld [vmem:[%s3 + $0x68] sm:$0xff]
  %v1060 = vld [vmem:[%s3 + $0x70] sm:$0xff]
  %v1061 = vld [vmem:[%s3 + $0x78] sm:$0xff]
  %v1062 = vld [vmem:[%s3 + $0x80] sm:$0x3f]
  %v1063 = vld [vmem:[%s3 + $0x88] sm:$0x3f]
  %v1064 = vld [vmem:[%s3 + $0x90] sm:$0x3f]
  %v1065 = vld [vmem:[%s3 + $0x98] sm:$0x3f]
  %v1066 = vld [vmem:[%s3 + $0xa0] sm:$0x3f]
  %v1067 = vld [vmem:[%s3 + $0xa8] sm:$0x3f]
  %v1068 = vld [vmem:[%s3 + $0xb0] sm:$0x3f]
  %v1069 = vld [vmem:[%s3 + $0xb8] sm:$0x3f]
  %v1070 = vld [vmem:[%s4] sm:$0xff]
  %v1072 = vlaneseq
  %v1073 = vshrl.u32 %v1072, 7
  %v1074 = vsub.s32 0, %v1073
  %v1075 = vrot.slane %v1070, %v1074
  %v1076 = vlaneseq
  %v1077 = vshrl.u32 %v1076, 7
  %v1078 = vsub.s32 1, %v1077
  %v1079 = vrot.slane %v1070, %v1078
  %v1080 = vlaneseq
  %v1081 = vshrl.u32 %v1080, 7
  %v1082 = vsub.s32 2, %v1081
  %v1083 = vrot.slane %v1070, %v1082
  %v1084 = vlaneseq
  %v1085 = vshrl.u32 %v1084, 7
  %v1086 = vsub.s32 3, %v1085
  %v1087 = vrot.slane %v1070, %v1086
  %v1088 = vlaneseq
  %v1089 = vshrl.u32 %v1088, 7
  %v1090 = vsub.s32 4, %v1089
  %v1091 = vrot.slane %v1070, %v1090
  %v1092 = vlaneseq
  %v1093 = vshrl.u32 %v1092, 7
  %v1094 = vsub.s32 5, %v1093
  %v1095 = vrot.slane %v1070, %v1094
  %v1096 = vlaneseq
  %v1097 = vshrl.u32 %v1096, 7
  %v1098 = vsub.s32 6, %v1097
  %v1099 = vrot.slane %v1070, %v1098
  %v1100 = vlaneseq
  %v1101 = vshrl.u32 %v1100, 7
  %v1102 = vsub.s32 7, %v1101
  %v1103 = vrot.slane %v1070, %v1102
  %1136 = vset.pattern.permute.xlu0 0
  %1137 = vperm.xlu0 %1136, %v1022
  %v1138 = vpop.permute.xlu0 %1137
  %1139 = vset.pattern.permute.xlu0 0
  %1140 = vperm.xlu0 %1139, %v1023
  %v1141 = vpop.permute.xlu0 %1140
  %1142 = vset.pattern.permute.xlu0 0
  %1143 = vperm.xlu0 %1142, %v1024
  %v1144 = vpop.permute.xlu0 %1143
  %1145 = vset.pattern.permute.xlu0 0
  %1146 = vperm.xlu0 %1145, %v1025
  %v1147 = vpop.permute.xlu0 %1146
  %1148 = vset.pattern.permute.xlu0 0
  %1149 = vperm.xlu0 %1148, %v1026
  %v1150 = vpop.permute.xlu0 %1149
  %1151 = vset.pattern.permute.xlu0 0
  %1152 = vperm.xlu0 %1151, %v1027
  %v1153 = vpop.permute.xlu0 %1152
  %1154 = vset.pattern.permute.xlu0 0
  %1155 = vperm.xlu0 %1154, %v1028
  %v1156 = vpop.permute.xlu0 %1155
  %1157 = vset.pattern.permute.xlu0 0
  %1158 = vperm.xlu0 %1157, %v1029
  %v1159 = vpop.permute.xlu0 %1158
  %1160 = vset.pattern.permute.xlu0 0
  %1161 = vperm.xlu0 %1160, %v1030
  %v1162 = vpop.permute.xlu0 %1161
  %1163 = vset.pattern.permute.xlu0 0
  %1164 = vperm.xlu0 %1163, %v1031
  %v1165 = vpop.permute.xlu0 %1164
  %1166 = vset.pattern.permute.xlu0 0
  %1167 = vperm.xlu0 %1166, %v1032
  %v1168 = vpop.permute.xlu0 %1167
  %1169 = vset.pattern.permute.xlu0 0
  %1170 = vperm.xlu0 %1169, %v1033
  %v1171 = vpop.permute.xlu0 %1170
  %1172 = vset.pattern.permute.xlu0 0
  %1173 = vperm.xlu0 %1172, %v1034
  %v1174 = vpop.permute.xlu0 %1173
  %1175 = vset.pattern.permute.xlu0 0
  %1176 = vperm.xlu0 %1175, %v1035
  %v1177 = vpop.permute.xlu0 %1176
  %1178 = vset.pattern.permute.xlu0 0
  %1179 = vperm.xlu0 %1178, %v1036
  %v1180 = vpop.permute.xlu0 %1179
  %1181 = vset.pattern.permute.xlu0 0
  %1182 = vperm.xlu0 %1181, %v1037
  %v1183 = vpop.permute.xlu0 %1182
  %1184 = vset.pattern.permute.xlu0 0
  %1185 = vperm.xlu0 %1184, %v1038
  %v1186 = vpop.permute.xlu0 %1185
  %1187 = vset.pattern.permute.xlu0 0
  %1188 = vperm.xlu0 %1187, %v1039
  %v1189 = vpop.permute.xlu0 %1188
  %1190 = vset.pattern.permute.xlu0 0
  %1191 = vperm.xlu0 %1190, %v1040
  %v1192 = vpop.permute.xlu0 %1191
  %1193 = vset.pattern.permute.xlu0 0
  %1194 = vperm.xlu0 %1193, %v1041
  %v1195 = vpop.permute.xlu0 %1194
  %1196 = vset.pattern.permute.xlu0 0
  %1197 = vperm.xlu0 %1196, %v1042
  %v1198 = vpop.permute.xlu0 %1197
  %1199 = vset.pattern.permute.xlu0 0
  %1200 = vperm.xlu0 %1199, %v1043
  %v1201 = vpop.permute.xlu0 %1200
  %1202 = vset.pattern.permute.xlu0 0
  %1203 = vperm.xlu0 %1202, %v1044
  %v1204 = vpop.permute.xlu0 %1203
  %1205 = vset.pattern.permute.xlu0 0
  %1206 = vperm.xlu0 %1205, %v1045
  %v1207 = vpop.permute.xlu0 %1206
  %v1208 = vlaneseq
  %v1209 = vand.u32 %v1208, 127
  %v1210 = vlaneseq
  %v1211 = vshrl.u32 %v1210, 7
  %v1212 = vsub.s32 %v1209, %v1211
  %v1213 = vrot.slane %v1138, %v1212
  %v1214 = vadd.s32 %v1209, 4294967288
  %v1215 = vlaneseq
  %v1216 = vshrl.u32 %v1215, 7
  %v1217 = vsub.s32 %v1214, %v1216
  %v1218 = vrot.slane %v1141, %v1217
  %vm1219 = vcmask 130112
  %v1220 = vsel %vm1219, %v1218, %v1213
  %v1221 = vadd.s32 %v1209, 4294967280
  %v1222 = vlaneseq
  %v1223 = vshrl.u32 %v1222, 7
  %v1224 = vsub.s32 %v1221, %v1223
  %v1225 = vrot.slane %v1144, %v1224
  %vm1226 = vcmask 195712
  %v1227 = vsel %vm1226, %v1225, %v1220
  %v1228 = vlaneseq
  %v1229 = vshrl.u32 %v1228, 7
  %v1230 = vsub.s32 %v1209, %v1229
  %v1231 = vrot.slane %v1147, %v1230
  %v1232 = vlaneseq
  %v1233 = vshrl.u32 %v1232, 7
  %v1234 = vsub.s32 %v1214, %v1233
  %v1235 = vrot.slane %v1150, %v1234
  %v1236 = vsel %vm1219, %v1235, %v1231
  %v1237 = vlaneseq
  %v1238 = vshrl.u32 %v1237, 7
  %v1239 = vsub.s32 %v1221, %v1238
  %v1240 = vrot.slane %v1153, %v1239
  %v1241 = vsel %vm1226, %v1240, %v1236
  %v1242 = vlaneseq
  %v1243 = vshrl.u32 %v1242, 7
  %v1244 = vsub.s32 %v1209, %v1243
  %v1245 = vrot.slane %v1156, %v1244
  %v1246 = vlaneseq
  %v1247 = vshrl.u32 %v1246, 7
  %v1248 = vsub.s32 %v1214, %v1247
  %v1249 = vrot.slane %v1159, %v1248
  %v1250 = vsel %vm1219, %v1249, %v1245
  %v1251 = vlaneseq
  %v1252 = vshrl.u32 %v1251, 7
  %v1253 = vsub.s32 %v1221, %v1252
  %v1254 = vrot.slane %v1162, %v1253
  %v1255 = vsel %vm1226, %v1254, %v1250
  %v1256 = vlaneseq
  %v1257 = vshrl.u32 %v1256, 7
  %v1258 = vsub.s32 %v1209, %v1257
  %v1259 = vrot.slane %v1165, %v1258
  %v1260 = vlaneseq
  %v1261 = vshrl.u32 %v1260, 7
  %v1262 = vsub.s32 %v1214, %v1261
  %v1263 = vrot.slane %v1168, %v1262
  %v1264 = vsel %vm1219, %v1263, %v1259
  %v1265 = vlaneseq
  %v1266 = vshrl.u32 %v1265, 7
  %v1267 = vsub.s32 %v1221, %v1266
  %v1268 = vrot.slane %v1171, %v1267
  %v1269 = vsel %vm1226, %v1268, %v1264
  %v1270 = vlaneseq
  %v1271 = vshrl.u32 %v1270, 7
  %v1272 = vsub.s32 %v1209, %v1271
  %v1273 = vrot.slane %v1174, %v1272
  %v1274 = vlaneseq
  %v1275 = vshrl.u32 %v1274, 7
  %v1276 = vsub.s32 %v1214, %v1275
  %v1277 = vrot.slane %v1177, %v1276
  %v1278 = vsel %vm1219, %v1277, %v1273
  %v1279 = vlaneseq
  %v1280 = vshrl.u32 %v1279, 7
  %v1281 = vsub.s32 %v1221, %v1280
  %v1282 = vrot.slane %v1180, %v1281
  %v1283 = vsel %vm1226, %v1282, %v1278
  %v1284 = vlaneseq
  %v1285 = vshrl.u32 %v1284, 7
  %v1286 = vsub.s32 %v1209, %v1285
  %v1287 = vrot.slane %v1183, %v1286
  %v1288 = vlaneseq
  %v1289 = vshrl.u32 %v1288, 7
  %v1290 = vsub.s32 %v1214, %v1289
  %v1291 = vrot.slane %v1186, %v1290
  %v1292 = vsel %vm1219, %v1291, %v1287
  %v1293 = vlaneseq
  %v1294 = vshrl.u32 %v1293, 7
  %v1295 = vsub.s32 %v1221, %v1294
  %v1296 = vrot.slane %v1189, %v1295
  %v1297 = vsel %vm1226, %v1296, %v1292
  %v1298 = vlaneseq
  %v1299 = vshrl.u32 %v1298, 7
  %v1300 = vsub.s32 %v1209, %v1299
  %v1301 = vrot.slane %v1192, %v1300
  %v1302 = vlaneseq
  %v1303 = vshrl.u32 %v1302, 7
  %v1304 = vsub.s32 %v1214, %v1303
  %v1305 = vrot.slane %v1195, %v1304
  %v1306 = vsel %vm1219, %v1305, %v1301
  %v1307 = vlaneseq
  %v1308 = vshrl.u32 %v1307, 7
  %v1309 = vsub.s32 %v1221, %v1308
  %v1310 = vrot.slane %v1198, %v1309
  %v1311 = vsel %vm1226, %v1310, %v1306
  %v1312 = vlaneseq
  %v1313 = vshrl.u32 %v1312, 7
  %v1314 = vsub.s32 %v1209, %v1313
  %v1315 = vrot.slane %v1201, %v1314
  %v1316 = vlaneseq
  %v1317 = vshrl.u32 %v1316, 7
  %v1318 = vsub.s32 %v1214, %v1317
  %v1319 = vrot.slane %v1204, %v1318
  %v1320 = vsel %vm1219, %v1319, %v1315
  %v1321 = vlaneseq
  %v1322 = vshrl.u32 %v1321, 7
  %v1323 = vsub.s32 %v1221, %v1322
  %v1324 = vrot.slane %v1207, %v1323
  %v1325 = vsel %vm1226, %v1324, %v1320
  %vm1326 = vcmask 1041409
  %v1327 = vsel %vm1326, %v1241, %v1227
  %vm1328 = vcmask 1042434
  %v1329 = vsel %vm1328, %v1255, %v1327
  %vm1330 = vcmask 1043459
  %v1331 = vsel %vm1330, %v1269, %v1329
  %vm1332 = vcmask 1044484
  %v1333 = vsel %vm1332, %v1283, %v1331
  %vm1334 = vcmask 1045509
  %v1335 = vsel %vm1334, %v1297, %v1333
  %vm1336 = vcmask 1046534
  %v1337 = vsel %vm1336, %v1311, %v1335
  %vm1338 = vcmask 1047559
  %v1339 = vsel %vm1338, %v1325, %v1337
  %vm1340 = vcmask 179200
  %v1341 = vsel %vm1340, %v1339, 0
  %v1344 = vsel %vm634, %v1062, 0
  %v1347 = vsel %vm634, %v1063, 0
  %v1350 = vsel %vm634, %v1064, 0
  %v1353 = vsel %vm634, %v1065, 0
  %v1356 = vsel %vm634, %v1066, 0
  %v1359 = vsel %vm634, %v1067, 0
  %v1362 = vsel %vm634, %v1068, 0
  %v1365 = vsel %vm634, %v1069, 0
  %1367 = vmatprep.subr.mxu0 %v1047
  %1368 = vmatpush1.msra.mxu0 %v1046
  %1369 = vmatprep.subr.mxu0 %v1055
  %1370 = vmatpush1.msra.mxu0 %v1054
  %1371 = vmatprep.subr.mxu0 %v1347
  %1372 = vmatpush1.msra.mxu0 %v1344
  %1373 = vmatprep.subr.mxu0 0.0
  %1374 = vmatpush1.msra.mxu0 0.0
  %1375 = vmatprep.subr.mxu0 0.0
  %1376 = vmatpush1.msra.mxu0 0.0
  %1377 = vmatprep.subr.mxu0 0.0
  %1378 = vmatpush1.msra.mxu0 0.0
  %1379 = vmatprep.subr.mxu0 0.0
  %1380 = vmatpush1.msra.mxu0 0.0
  %1381 = vmatprep.subr.mxu0 0.0
  %1382 = vmatpush1.msra.mxu0 0.0
  %1383 = vmatprep.subr.mxu0 0.0
  %1384 = vmatpush1.msra.mxu0 0.0
  %1385 = vmatprep.subr.mxu0 0.0
  %1386 = vmatpush1.msra.mxu0 0.0
  %1387 = vmatprep.subr.mxu0 0.0
  %1388 = vmatpush1.msra.mxu0 0.0
  %1389 = vmatprep.subr.mxu0 0.0
  %1390 = vmatpush1.msra.mxu0 0.0
  %1391 = vmatprep.subr.mxu0 0.0
  %1392 = vmatpush1.msra.mxu0 0.0
  %1393 = vmatprep.subr.mxu0 0.0
  %1394 = vmatpush1.msra.mxu0 0.0
  %1395 = vmatprep.subr.mxu0 0.0
  %1396 = vmatpush1.msra.mxu0 0.0
  %1397 = vmatprep.subr.mxu0 0.0
  %1398 = vmatpush1.msra.mxu0 0.0
  %1399 = vmatprep.subr.mxu0 0.0
  %1400 = vmatpush1.msra.mxu0 0.0
  %1401 = vmatprep.subr.mxu0 0.0
  %1402 = vmatpush1.msra.mxu0 0.0
  %1403 = vmatprep.subr.mxu0 0.0
  %1404 = vmatpush1.msra.mxu0 0.0
  %1405 = vmatprep.subr.mxu0 0.0
  %1406 = vmatpush1.msra.mxu0 0.0
  %1407 = vmatprep.subr.mxu0 0.0
  %1408 = vmatpush1.msra.mxu0 0.0
  %1409 = vmatprep.subr.mxu0 0.0
  %1410 = vmatpush1.msra.mxu0 0.0
  %1411 = vmatprep.subr.mxu0 0.0
  %1412 = vmatpush1.msra.mxu0 0.0
  %1413 = vmatprep.subr.mxu0 0.0
  %1414 = vmatpush1.msra.mxu0 0.0
  %1415 = vmatprep.subr.mxu0 0.0
  %1416 = vmatpush1.msra.mxu0 0.0
  %1417 = vmatprep.subr.mxu0 0.0
  %1418 = vmatpush1.msra.mxu0 0.0
  %1419 = vmatprep.subr.mxu0 0.0
  %1420 = vmatpush1.msra.mxu0 0.0
  %1421 = vmatprep.subr.mxu0 0.0
  %1422 = vmatpush1.msra.mxu0 0.0
  %1423 = vmatprep.subr.mxu0 0.0
  %1424 = vmatpush1.msra.mxu0 0.0
  %1425 = vmatprep.subr.mxu0 0.0
  %1426 = vmatpush1.msra.mxu0 0.0
  %1427 = vmatprep.subr.mxu0 0.0
  %1428 = vmatpush1.msra.mxu0 0.0
  %1429 = vmatprep.subr.mxu0 0.0
  %1430 = vmatpush1.msra.mxu0 0.0
  %1431 = vmatprep.mubr.f32.mxu0 0.0
  %1432 = vmatmul.mubr.f32.gmra.mrb[0].mxu0 %v1341
  %v1433 = vpop.f32.mrb[0].mxu0
  %v1434 = vadd.f32 %v1075, %v1433
  %v1435 = vpop.f32.mrb[0].mxu0
  %v1436 = vadd.f32 %v1079, %v1435
  %1437 = vdwg.mxu0
  %1438 = vmatprep.subr.mxu0 %v1049
  %1439 = vmatpush1.msra.mxu0 %v1048
  %1440 = vmatprep.subr.mxu0 %v1057
  %1441 = vmatpush1.msra.mxu0 %v1056
  %1442 = vmatprep.subr.mxu0 %v1353
  %1443 = vmatpush1.msra.mxu0 %v1350
  %1444 = vmatprep.subr.mxu0 0.0
  %1445 = vmatpush1.msra.mxu0 0.0
  %1446 = vmatprep.subr.mxu0 0.0
  %1447 = vmatpush1.msra.mxu0 0.0
  %1448 = vmatprep.subr.mxu0 0.0
  %1449 = vmatpush1.msra.mxu0 0.0
  %1450 = vmatprep.subr.mxu0 0.0
  %1451 = vmatpush1.msra.mxu0 0.0
  %1452 = vmatprep.subr.mxu0 0.0
  %1453 = vmatpush1.msra.mxu0 0.0
  %1454 = vmatprep.subr.mxu0 0.0
  %1455 = vmatpush1.msra.mxu0 0.0
  %1456 = vmatprep.subr.mxu0 0.0
  %1457 = vmatpush1.msra.mxu0 0.0
  %1458 = vmatprep.subr.mxu0 0.0
  %1459 = vmatpush1.msra.mxu0 0.0
  %1460 = vmatprep.subr.mxu0 0.0
  %1461 = vmatpush1.msra.mxu0 0.0
  %1462 = vmatprep.subr.mxu0 0.0
  %1463 = vmatpush1.msra.mxu0 0.0
  %1464 = vmatprep.subr.mxu0 0.0
  %1465 = vmatpush1.msra.mxu0 0.0
  %1466 = vmatprep.subr.mxu0 0.0
  %1467 = vmatpush1.msra.mxu0 0.0
  %1468 = vmatprep.subr.mxu0 0.0
  %1469 = vmatpush1.msra.mxu0 0.0
  %1470 = vmatprep.subr.mxu0 0.0
  %1471 = vmatpush1.msra.mxu0 0.0
  %1472 = vmatprep.subr.mxu0 0.0
  %1473 = vmatpush1.msra.mxu0 0.0
  %1474 = vmatprep.subr.mxu0 0.0
  %1475 = vmatpush1.msra.mxu0 0.0
  %1476 = vmatprep.subr.mxu0 0.0
  %1477 = vmatpush1.msra.mxu0 0.0
  %1478 = vmatprep.subr.mxu0 0.0
  %1479 = vmatpush1.msra.mxu0 0.0
  %1480 = vmatprep.subr.mxu0 0.0
  %1481 = vmatpush1.msra.mxu0 0.0
  %1482 = vmatprep.subr.mxu0 0.0
  %1483 = vmatpush1.msra.mxu0 0.0
  %1484 = vmatprep.subr.mxu0 0.0
  %1485 = vmatpush1.msra.mxu0 0.0
  %1486 = vmatprep.subr.mxu0 0.0
  %1487 = vmatpush1.msra.mxu0 0.0
  %1488 = vmatprep.subr.mxu0 0.0
  %1489 = vmatpush1.msra.mxu0 0.0
  %1490 = vmatprep.subr.mxu0 0.0
  %1491 = vmatpush1.msra.mxu0 0.0
  %1492 = vmatprep.subr.mxu0 0.0
  %1493 = vmatpush1.msra.mxu0 0.0
  %1494 = vmatprep.subr.mxu0 0.0
  %1495 = vmatpush1.msra.mxu0 0.0
  %1496 = vmatprep.subr.mxu0 0.0
  %1497 = vmatpush1.msra.mxu0 0.0
  %1498 = vmatprep.subr.mxu0 0.0
  %1499 = vmatpush1.msra.mxu0 0.0
  %1500 = vmatprep.subr.mxu0 0.0
  %1501 = vmatpush1.msra.mxu0 0.0
  %1502 = vmatprep.mubr.f32.mxu0 0.0
  %1503 = vmatmul.mubr.f32.gmra.mrb[0].mxu0 %v1341
  %v1504 = vpop.f32.mrb[0].mxu0
  %v1505 = vadd.f32 %v1083, %v1504
  %v1506 = vpop.f32.mrb[0].mxu0
  %v1507 = vadd.f32 %v1087, %v1506
  %1508 = vdwg.mxu0
  %1509 = vmatprep.subr.mxu0 %v1051
  %1510 = vmatpush1.msra.mxu0 %v1050
  %1511 = vmatprep.subr.mxu0 %v1059
  %1512 = vmatpush1.msra.mxu0 %v1058
  %1513 = vmatprep.subr.mxu0 %v1359
  %1514 = vmatpush1.msra.mxu0 %v1356
  %1515 = vmatprep.subr.mxu0 0.0
  %1516 = vmatpush1.msra.mxu0 0.0
  %1517 = vmatprep.subr.mxu0 0.0
  %1518 = vmatpush1.msra.mxu0 0.0
  %1519 = vmatprep.subr.mxu0 0.0
  %1520 = vmatpush1.msra.mxu0 0.0
  %1521 = vmatprep.subr.mxu0 0.0
  %1522 = vmatpush1.msra.mxu0 0.0
  %1523 = vmatprep.subr.mxu0 0.0
  %1524 = vmatpush1.msra.mxu0 0.0
  %1525 = vmatprep.subr.mxu0 0.0
  %1526 = vmatpush1.msra.mxu0 0.0
  %1527 = vmatprep.subr.mxu0 0.0
  %1528 = vmatpush1.msra.mxu0 0.0
  %1529 = vmatprep.subr.mxu0 0.0
  %1530 = vmatpush1.msra.mxu0 0.0
  %1531 = vmatprep.subr.mxu0 0.0
  %1532 = vmatpush1.msra.mxu0 0.0
  %1533 = vmatprep.subr.mxu0 0.0
  %1534 = vmatpush1.msra.mxu0 0.0
  %1535 = vmatprep.subr.mxu0 0.0
  %1536 = vmatpush1.msra.mxu0 0.0
  %1537 = vmatprep.subr.mxu0 0.0
  %1538 = vmatpush1.msra.mxu0 0.0
  %1539 = vmatprep.subr.mxu0 0.0
  %1540 = vmatpush1.msra.mxu0 0.0
  %1541 = vmatprep.subr.mxu0 0.0
  %1542 = vmatpush1.msra.mxu0 0.0
  %1543 = vmatprep.subr.mxu0 0.0
  %1544 = vmatpush1.msra.mxu0 0.0
  %1545 = vmatprep.subr.mxu0 0.0
  %1546 = vmatpush1.msra.mxu0 0.0
  %1547 = vmatprep.subr.mxu0 0.0
  %1548 = vmatpush1.msra.mxu0 0.0
  %1549 = vmatprep.subr.mxu0 0.0
  %1550 = vmatpush1.msra.mxu0 0.0
  %1551 = vmatprep.subr.mxu0 0.0
  %1552 = vmatpush1.msra.mxu0 0.0
  %1553 = vmatprep.subr.mxu0 0.0
  %1554 = vmatpush1.msra.mxu0 0.0
  %1555 = vmatprep.subr.mxu0 0.0
  %1556 = vmatpush1.msra.mxu0 0.0
  %1557 = vmatprep.subr.mxu0 0.0
  %1558 = vmatpush1.msra.mxu0 0.0
  %1559 = vmatprep.subr.mxu0 0.0
  %1560 = vmatpush1.msra.mxu0 0.0
  %1561 = vmatprep.subr.mxu0 0.0
  %1562 = vmatpush1.msra.mxu0 0.0
  %1563 = vmatprep.subr.mxu0 0.0
  %1564 = vmatpush1.msra.mxu0 0.0
  %1565 = vmatprep.subr.mxu0 0.0
  %1566 = vmatpush1.msra.mxu0 0.0
  %1567 = vmatprep.subr.mxu0 0.0
  %1568 = vmatpush1.msra.mxu0 0.0
  %1569 = vmatprep.subr.mxu0 0.0
  %1570 = vmatpush1.msra.mxu0 0.0
  %1571 = vmatprep.subr.mxu0 0.0
  %1572 = vmatpush1.msra.mxu0 0.0
  %1573 = vmatprep.mubr.f32.mxu0 0.0
  %1574 = vmatmul.mubr.f32.gmra.mrb[0].mxu0 %v1341
  %v1575 = vpop.f32.mrb[0].mxu0
  %v1576 = vadd.f32 %v1091, %v1575
  %v1577 = vpop.f32.mrb[0].mxu0
  %v1578 = vadd.f32 %v1095, %v1577
  %1579 = vdwg.mxu0
  %1580 = vmatprep.subr.mxu0 %v1053
  %1581 = vmatpush1.msra.mxu0 %v1052
  %1582 = vmatprep.subr.mxu0 %v1061
  %1583 = vmatpush1.msra.mxu0 %v1060
  %1584 = vmatprep.subr.mxu0 %v1365
  %1585 = vmatpush1.msra.mxu0 %v1362
  %1586 = vmatprep.subr.mxu0 0.0
  %1587 = vmatpush1.msra.mxu0 0.0
  %1588 = vmatprep.subr.mxu0 0.0
  %1589 = vmatpush1.msra.mxu0 0.0
  %1590 = vmatprep.subr.mxu0 0.0
  %1591 = vmatpush1.msra.mxu0 0.0
  %1592 = vmatprep.subr.mxu0 0.0
  %1593 = vmatpush1.msra.mxu0 0.0
  %1594 = vmatprep.subr.mxu0 0.0
  %1595 = vmatpush1.msra.mxu0 0.0
  %1596 = vmatprep.subr.mxu0 0.0
  %1597 = vmatpush1.msra.mxu0 0.0
  %1598 = vmatprep.subr.mxu0 0.0
  %1599 = vmatpush1.msra.mxu0 0.0
  %1600 = vmatprep.subr.mxu0 0.0
  %1601 = vmatpush1.msra.mxu0 0.0
  %1602 = vmatprep.subr.mxu0 0.0
  %1603 = vmatpush1.msra.mxu0 0.0
  %1604 = vmatprep.subr.mxu0 0.0
  %1605 = vmatpush1.msra.mxu0 0.0
  %1606 = vmatprep.subr.mxu0 0.0
  %1607 = vmatpush1.msra.mxu0 0.0
  %1608 = vmatprep.subr.mxu0 0.0
  %1609 = vmatpush1.msra.mxu0 0.0
  %1610 = vmatprep.subr.mxu0 0.0
  %1611 = vmatpush1.msra.mxu0 0.0
  %1612 = vmatprep.subr.mxu0 0.0
  %1613 = vmatpush1.msra.mxu0 0.0
  %1614 = vmatprep.subr.mxu0 0.0
  %1615 = vmatpush1.msra.mxu0 0.0
  %1616 = vmatprep.subr.mxu0 0.0
  %1617 = vmatpush1.msra.mxu0 0.0
  %1618 = vmatprep.subr.mxu0 0.0
  %1619 = vmatpush1.msra.mxu0 0.0
  %1620 = vmatprep.subr.mxu0 0.0
  %1621 = vmatpush1.msra.mxu0 0.0
  %1622 = vmatprep.subr.mxu0 0.0
  %1623 = vmatpush1.msra.mxu0 0.0
  %1624 = vmatprep.subr.mxu0 0.0
  %1625 = vmatpush1.msra.mxu0 0.0
  %1626 = vmatprep.subr.mxu0 0.0
  %1627 = vmatpush1.msra.mxu0 0.0
  %1628 = vmatprep.subr.mxu0 0.0
  %1629 = vmatpush1.msra.mxu0 0.0
  %1630 = vmatprep.subr.mxu0 0.0
  %1631 = vmatpush1.msra.mxu0 0.0
  %1632 = vmatprep.subr.mxu0 0.0
  %1633 = vmatpush1.msra.mxu0 0.0
  %1634 = vmatprep.subr.mxu0 0.0
  %1635 = vmatpush1.msra.mxu0 0.0
  %1636 = vmatprep.subr.mxu0 0.0
  %1637 = vmatpush1.msra.mxu0 0.0
  %1638 = vmatprep.subr.mxu0 0.0
  %1639 = vmatpush1.msra.mxu0 0.0
  %1640 = vmatprep.subr.mxu0 0.0
  %1641 = vmatpush1.msra.mxu0 0.0
  %1642 = vmatprep.subr.mxu0 0.0
  %1643 = vmatpush1.msra.mxu0 0.0
  %1644 = vmatprep.mubr.f32.mxu0 0.0
  %1645 = vmatmul.mubr.f32.gmra.mrb[0].mxu0 %v1341
  %v1646 = vpop.f32.mrb[0].mxu0
  %v1647 = vadd.f32 %v1099, %v1646
  %v1648 = vpop.f32.mrb[0].mxu0
  %v1649 = vadd.f32 %v1103, %v1648
  %1650 = vdwg.mxu0
  %vm1651 = vcmp.gt.f32.partialorder %v1434, 0.0
  %vm1652 = vcmp.gt.f32.partialorder %v1436, 0.0
  %vm1653 = vcmp.gt.f32.partialorder %v1505, 0.0
  %vm1654 = vcmp.gt.f32.partialorder %v1507, 0.0
  %vm1655 = vcmp.gt.f32.partialorder %v1576, 0.0
  %vm1656 = vcmp.gt.f32.partialorder %v1578, 0.0
  %vm1657 = vcmp.gt.f32.partialorder %v1647, 0.0
  %vm1658 = vcmp.gt.f32.partialorder %v1649, 0.0
  %v1659 = vmul.f32 %v1434, 0.01
  %v1660 = vmul.f32 %v1436, 0.01
  %v1661 = vmul.f32 %v1505, 0.01
  %v1662 = vmul.f32 %v1507, 0.01
  %v1663 = vmul.f32 %v1576, 0.01
  %v1664 = vmul.f32 %v1578, 0.01
  %v1665 = vmul.f32 %v1647, 0.01
  %v1666 = vmul.f32 %v1649, 0.01
  %v1667 = vsel %vm1651, %v1434, %v1659
  %v1668 = vsel %vm1652, %v1436, %v1660
  %v1669 = vsel %vm1653, %v1505, %v1661
  %v1670 = vsel %vm1654, %v1507, %v1662
  %v1671 = vsel %vm1655, %v1576, %v1663
  %v1672 = vsel %vm1656, %v1578, %v1664
  %v1673 = vsel %vm1657, %v1647, %v1665
  %v1674 = vsel %vm1658, %v1649, %v1666
  %v1675 = vld [vmem:[%s5] sm:$0xff]
  %v1676 = vld [vmem:[%s5 + $0x8] sm:$0xff]
  %v1677 = vld [vmem:[%s5 + $0x10] sm:$0xff]
  %v1678 = vld [vmem:[%s5 + $0x18] sm:$0xff]
  %v1679 = vld [vmem:[%s5 + $0x20] sm:$0xff]
  %v1680 = vld [vmem:[%s5 + $0x28] sm:$0xff]
  %v1681 = vld [vmem:[%s5 + $0x30] sm:$0xff]
  %v1682 = vld [vmem:[%s5 + $0x38] sm:$0xff]
  %v1683 = vld [vmem:[%s5 + $0x40] sm:$0xff]
  %v1684 = vld [vmem:[%s5 + $0x48] sm:$0xff]
  %v1685 = vld [vmem:[%s5 + $0x50] sm:$0xff]
  %v1686 = vld [vmem:[%s5 + $0x58] sm:$0xff]
  %v1687 = vld [vmem:[%s5 + $0x60] sm:$0xff]
  %v1688 = vld [vmem:[%s5 + $0x68] sm:$0xff]
  %v1689 = vld [vmem:[%s5 + $0x70] sm:$0xff]
  %v1690 = vld [vmem:[%s5 + $0x78] sm:$0xff]
  %v1691 = vld [vmem:[%s5 + $0x80] sm:$0xff]
  %v1692 = vld [vmem:[%s5 + $0x88] sm:$0xff]
  %v1693 = vld [vmem:[%s5 + $0x90] sm:$0xff]
  %v1694 = vld [vmem:[%s5 + $0x98] sm:$0xff]
  %v1695 = vld [vmem:[%s5 + $0xa0] sm:$0xff]
  %v1696 = vld [vmem:[%s5 + $0xa8] sm:$0xff]
  %v1697 = vld [vmem:[%s5 + $0xb0] sm:$0xff]
  %v1698 = vld [vmem:[%s5 + $0xb8] sm:$0xff]
  %v1699 = vld [vmem:[%s5 + $0xc0] sm:$0xff]
  %v1700 = vld [vmem:[%s5 + $0xc8] sm:$0xff]
  %v1701 = vld [vmem:[%s5 + $0xd0] sm:$0xff]
  %v1702 = vld [vmem:[%s5 + $0xd8] sm:$0xff]
  %v1703 = vld [vmem:[%s5 + $0xe0] sm:$0xff]
  %v1704 = vld [vmem:[%s5 + $0xe8] sm:$0xff]
  %v1705 = vld [vmem:[%s5 + $0xf0] sm:$0xff]
  %v1706 = vld [vmem:[%s5 + $0xf8] sm:$0xff]
  %v1707 = vld [vmem:[%s5 + $0x100] sm:$0xff]
  %v1708 = vld [vmem:[%s5 + $0x108] sm:$0xff]
  %v1709 = vld [vmem:[%s5 + $0x110] sm:$0xff]
  %v1710 = vld [vmem:[%s5 + $0x118] sm:$0xff]
  %v1711 = vld [vmem:[%s5 + $0x120] sm:$0xff]
  %v1712 = vld [vmem:[%s5 + $0x128] sm:$0xff]
  %v1713 = vld [vmem:[%s5 + $0x130] sm:$0xff]
  %v1714 = vld [vmem:[%s5 + $0x138] sm:$0xff]
  %v1715 = vld [vmem:[%s5 + $0x140] sm:$0xff]
  %v1716 = vld [vmem:[%s5 + $0x148] sm:$0xff]
  %v1717 = vld [vmem:[%s5 + $0x150] sm:$0xff]
  %v1718 = vld [vmem:[%s5 + $0x158] sm:$0xff]
  %v1719 = vld [vmem:[%s5 + $0x160] sm:$0xff]
  %v1720 = vld [vmem:[%s5 + $0x168] sm:$0xff]
  %v1721 = vld [vmem:[%s5 + $0x170] sm:$0xff]
  %v1722 = vld [vmem:[%s5 + $0x178] sm:$0xff]
  %v1723 = vld [vmem:[%s5 + $0x180] sm:$0xff]
  %v1724 = vld [vmem:[%s5 + $0x188] sm:$0xff]
  %v1725 = vld [vmem:[%s5 + $0x190] sm:$0xff]
  %v1726 = vld [vmem:[%s5 + $0x198] sm:$0xff]
  %v1727 = vld [vmem:[%s5 + $0x1a0] sm:$0xff]
  %v1728 = vld [vmem:[%s5 + $0x1a8] sm:$0xff]
  %v1729 = vld [vmem:[%s5 + $0x1b0] sm:$0xff]
  %v1730 = vld [vmem:[%s5 + $0x1b8] sm:$0xff]
  %v1731 = vld [vmem:[%s5 + $0x1c0] sm:$0xff]
  %v1732 = vld [vmem:[%s5 + $0x1c8] sm:$0xff]
  %v1733 = vld [vmem:[%s5 + $0x1d0] sm:$0xff]
  %v1734 = vld [vmem:[%s5 + $0x1d8] sm:$0xff]
  %v1735 = vld [vmem:[%s5 + $0x1e0] sm:$0xff]
  %v1736 = vld [vmem:[%s5 + $0x1e8] sm:$0xff]
  %v1737 = vld [vmem:[%s5 + $0x1f0] sm:$0xff]
  %v1738 = vld [vmem:[%s5 + $0x1f8] sm:$0xff]
  %v1739 = vld [vmem:[%s5 + $0x200] sm:$0xff]
  %v1740 = vld [vmem:[%s5 + $0x208] sm:$0xff]
  %v1741 = vld [vmem:[%s5 + $0x210] sm:$0xff]
  %v1742 = vld [vmem:[%s5 + $0x218] sm:$0xff]
  %v1743 = vld [vmem:[%s5 + $0x220] sm:$0xff]
  %v1744 = vld [vmem:[%s5 + $0x228] sm:$0xff]
  %v1745 = vld [vmem:[%s5 + $0x230] sm:$0xff]
  %v1746 = vld [vmem:[%s5 + $0x238] sm:$0xff]
  %v1747 = vld [vmem:[%s5 + $0x240] sm:$0xff]
  %v1748 = vld [vmem:[%s5 + $0x248] sm:$0xff]
  %v1749 = vld [vmem:[%s5 + $0x250] sm:$0xff]
  %v1750 = vld [vmem:[%s5 + $0x258] sm:$0xff]
  %v1751 = vld [vmem:[%s5 + $0x260] sm:$0xff]
  %v1752 = vld [vmem:[%s5 + $0x268] sm:$0xff]
  %v1753 = vld [vmem:[%s5 + $0x270] sm:$0xff]
  %v1754 = vld [vmem:[%s5 + $0x278] sm:$0xff]
  %v1755 = vld [vmem:[%s5 + $0x280] sm:$0xff]
  %v1756 = vld [vmem:[%s5 + $0x288] sm:$0xff]
  %v1757 = vld [vmem:[%s5 + $0x290] sm:$0xff]
  %v1758 = vld [vmem:[%s5 + $0x298] sm:$0xff]
  %v1759 = vld [vmem:[%s5 + $0x2a0] sm:$0xff]
  %v1760 = vld [vmem:[%s5 + $0x2a8] sm:$0xff]
  %v1761 = vld [vmem:[%s5 + $0x2b0] sm:$0xff]
  %v1762 = vld [vmem:[%s5 + $0x2b8] sm:$0xff]
  %v1763 = vld [vmem:[%s5 + $0x2c0] sm:$0xff]
  %v1764 = vld [vmem:[%s5 + $0x2c8] sm:$0xff]
  %v1765 = vld [vmem:[%s5 + $0x2d0] sm:$0xff]
  %v1766 = vld [vmem:[%s5 + $0x2d8] sm:$0xff]
  %v1767 = vld [vmem:[%s5 + $0x2e0] sm:$0xff]
  %v1768 = vld [vmem:[%s5 + $0x2e8] sm:$0xff]
  %v1769 = vld [vmem:[%s5 + $0x2f0] sm:$0xff]
  %v1770 = vld [vmem:[%s5 + $0x2f8] sm:$0xff]
  %v1771 = vld [vmem:[%s5 + $0x300] sm:$0xff]
  %v1772 = vld [vmem:[%s5 + $0x308] sm:$0xff]
  %v1773 = vld [vmem:[%s5 + $0x310] sm:$0xff]
  %v1774 = vld [vmem:[%s5 + $0x318] sm:$0xff]
  %v1775 = vld [vmem:[%s5 + $0x320] sm:$0xff]
  %v1776 = vld [vmem:[%s5 + $0x328] sm:$0xff]
  %v1777 = vld [vmem:[%s5 + $0x330] sm:$0xff]
  %v1778 = vld [vmem:[%s5 + $0x338] sm:$0xff]
  %v1779 = vld [vmem:[%s5 + $0x340] sm:$0xff]
  %v1780 = vld [vmem:[%s5 + $0x348] sm:$0xff]
  %v1781 = vld [vmem:[%s5 + $0x350] sm:$0xff]
  %v1782 = vld [vmem:[%s5 + $0x358] sm:$0xff]
  %v1783 = vld [vmem:[%s5 + $0x360] sm:$0xff]
  %v1784 = vld [vmem:[%s5 + $0x368] sm:$0xff]
  %v1785 = vld [vmem:[%s5 + $0x370] sm:$0xff]
  %v1786 = vld [vmem:[%s5 + $0x378] sm:$0xff]
  %v1787 = vld [vmem:[%s5 + $0x380] sm:$0xff]
  %v1788 = vld [vmem:[%s5 + $0x388] sm:$0xff]
  %v1789 = vld [vmem:[%s5 + $0x390] sm:$0xff]
  %v1790 = vld [vmem:[%s5 + $0x398] sm:$0xff]
  %v1791 = vld [vmem:[%s5 + $0x3a0] sm:$0xff]
  %v1792 = vld [vmem:[%s5 + $0x3a8] sm:$0xff]
  %v1793 = vld [vmem:[%s5 + $0x3b0] sm:$0xff]
  %v1794 = vld [vmem:[%s5 + $0x3b8] sm:$0xff]
  %v1795 = vld [vmem:[%s5 + $0x3c0] sm:$0xff]
  %v1796 = vld [vmem:[%s5 + $0x3c8] sm:$0xff]
  %v1797 = vld [vmem:[%s5 + $0x3d0] sm:$0xff]
  %v1798 = vld [vmem:[%s5 + $0x3d8] sm:$0xff]
  %v1799 = vld [vmem:[%s5 + $0x3e0] sm:$0xff]
  %v1800 = vld [vmem:[%s6] sm:$0x1]
  %v1802 = vlaneseq
  %v1803 = vshrl.u32 %v1802, 7
  %v1804 = vsub.s32 0, %v1803
  %v1805 = vrot.slane %v1800, %v1804
  %vm1807 = vcmask 850944
  %v1809 = vsel %vm1807, %v1674, 0
  %1811 = vmatprep.subr.mxu0 0.0
  %1812 = vmatpush1.msra.mxu0 %v1675
  %1813 = vmatprep.subr.mxu0 0.0
  %1814 = vmatpush1.msra.mxu0 %v1676
  %1815 = vmatprep.subr.mxu0 0.0
  %1816 = vmatpush1.msra.mxu0 %v1677
  %1817 = vmatprep.subr.mxu0 0.0
  %1818 = vmatpush1.msra.mxu0 %v1678
  %1819 = vmatprep.subr.mxu0 0.0
  %1820 = vmatpush1.msra.mxu0 %v1679
  %1821 = vmatprep.subr.mxu0 0.0
  %1822 = vmatpush1.msra.mxu0 %v1680
  %1823 = vmatprep.subr.mxu0 0.0
  %1824 = vmatpush1.msra.mxu0 %v1681
  %1825 = vmatprep.subr.mxu0 0.0
  %1826 = vmatpush1.msra.mxu0 %v1682
  %1827 = vmatprep.subr.mxu0 0.0
  %1828 = vmatpush1.msra.mxu0 %v1683
  %1829 = vmatprep.subr.mxu0 0.0
  %1830 = vmatpush1.msra.mxu0 %v1684
  %1831 = vmatprep.subr.mxu0 0.0
  %1832 = vmatpush1.msra.mxu0 %v1685
  %1833 = vmatprep.subr.mxu0 0.0
  %1834 = vmatpush1.msra.mxu0 %v1686
  %1835 = vmatprep.subr.mxu0 0.0
  %1836 = vmatpush1.msra.mxu0 %v1687
  %1837 = vmatprep.subr.mxu0 0.0
  %1838 = vmatpush1.msra.mxu0 %v1688
  %1839 = vmatprep.subr.mxu0 0.0
  %1840 = vmatpush1.msra.mxu0 %v1689
  %1841 = vmatprep.subr.mxu0 0.0
  %1842 = vmatpush1.msra.mxu0 %v1690
  %1843 = vmatprep.subr.mxu0 0.0
  %1844 = vmatpush1.msra.mxu0 %v1691
  %1845 = vmatprep.subr.mxu0 0.0
  %1846 = vmatpush1.msra.mxu0 %v1692
  %1847 = vmatprep.subr.mxu0 0.0
  %1848 = vmatpush1.msra.mxu0 %v1693
  %1849 = vmatprep.subr.mxu0 0.0
  %1850 = vmatpush1.msra.mxu0 %v1694
  %1851 = vmatprep.subr.mxu0 0.0
  %1852 = vmatpush1.msra.mxu0 %v1695
  %1853 = vmatprep.subr.mxu0 0.0
  %1854 = vmatpush1.msra.mxu0 %v1696
  %1855 = vmatprep.subr.mxu0 0.0
  %1856 = vmatpush1.msra.mxu0 %v1697
  %1857 = vmatprep.subr.mxu0 0.0
  %1858 = vmatpush1.msra.mxu0 %v1698
  %1859 = vmatprep.subr.mxu0 0.0
  %1860 = vmatpush1.msra.mxu0 %v1699
  %1861 = vmatprep.subr.mxu0 0.0
  %1862 = vmatpush1.msra.mxu0 %v1700
  %1863 = vmatprep.subr.mxu0 0.0
  %1864 = vmatpush1.msra.mxu0 %v1701
  %1865 = vmatprep.subr.mxu0 0.0
  %1866 = vmatpush1.msra.mxu0 %v1702
  %1867 = vmatprep.subr.mxu0 0.0
  %1868 = vmatpush1.msra.mxu0 %v1703
  %1869 = vmatprep.subr.mxu0 0.0
  %1870 = vmatpush1.msra.mxu0 %v1704
  %1871 = vmatprep.subr.mxu0 0.0
  %1872 = vmatpush1.msra.mxu0 %v1705
  %1873 = vmatprep.subr.mxu0 0.0
  %1874 = vmatpush1.msra.mxu0 %v1706
  %1875 = vmatprep.mubr.f32.mxu0 %v1668
  %1876 = vmatmul.mubr.f32.gmra.mrb[0].mxu0 %v1667
  %v1877 = vpop.f32.mrb[0].mxu0
  %v1878 = vadd.f32 %v1805, %v1877
  %v1879 = vpop.f32.mrb[0].mxu0
  %1880 = vdwg.mxu0
  %1881 = vmatprep.subr.mxu0 0.0
  %1882 = vmatpush1.msra.mxu0 %v1707
  %1883 = vmatprep.subr.mxu0 0.0
  %1884 = vmatpush1.msra.mxu0 %v1708
  %1885 = vmatprep.subr.mxu0 0.0
  %1886 = vmatpush1.msra.mxu0 %v1709
  %1887 = vmatprep.subr.mxu0 0.0
  %1888 = vmatpush1.msra.mxu0 %v1710
  %1889 = vmatprep.subr.mxu0 0.0
  %1890 = vmatpush1.msra.mxu0 %v1711
  %1891 = vmatprep.subr.mxu0 0.0
  %1892 = vmatpush1.msra.mxu0 %v1712
  %1893 = vmatprep.subr.mxu0 0.0
  %1894 = vmatpush1.msra.mxu0 %v1713
  %1895 = vmatprep.subr.mxu0 0.0
  %1896 = vmatpush1.msra.mxu0 %v1714
  %1897 = vmatprep.subr.mxu0 0.0
  %1898 = vmatpush1.msra.mxu0 %v1715
  %1899 = vmatprep.subr.mxu0 0.0
  %1900 = vmatpush1.msra.mxu0 %v1716
  %1901 = vmatprep.subr.mxu0 0.0
  %1902 = vmatpush1.msra.mxu0 %v1717
  %1903 = vmatprep.subr.mxu0 0.0
  %1904 = vmatpush1.msra.mxu0 %v1718
  %1905 = vmatprep.subr.mxu0 0.0
  %1906 = vmatpush1.msra.mxu0 %v1719
  %1907 = vmatprep.subr.mxu0 0.0
  %1908 = vmatpush1.msra.mxu0 %v1720
  %1909 = vmatprep.subr.mxu0 0.0
  %1910 = vmatpush1.msra.mxu0 %v1721
  %1911 = vmatprep.subr.mxu0 0.0
  %1912 = vmatpush1.msra.mxu0 %v1722
  %1913 = vmatprep.subr.mxu0 0.0
  %1914 = vmatpush1.msra.mxu0 %v1723
  %1915 = vmatprep.subr.mxu0 0.0
  %1916 = vmatpush1.msra.mxu0 %v1724
  %1917 = vmatprep.subr.mxu0 0.0
  %1918 = vmatpush1.msra.mxu0 %v1725
  %1919 = vmatprep.subr.mxu0 0.0
  %1920 = vmatpush1.msra.mxu0 %v1726
  %1921 = vmatprep.subr.mxu0 0.0
  %1922 = vmatpush1.msra.mxu0 %v1727
  %1923 = vmatprep.subr.mxu0 0.0
  %1924 = vmatpush1.msra.mxu0 %v1728
  %1925 = vmatprep.subr.mxu0 0.0
  %1926 = vmatpush1.msra.mxu0 %v1729
  %1927 = vmatprep.subr.mxu0 0.0
  %1928 = vmatpush1.msra.mxu0 %v1730
  %1929 = vmatprep.subr.mxu0 0.0
  %1930 = vmatpush1.msra.mxu0 %v1731
  %1931 = vmatprep.subr.mxu0 0.0
  %1932 = vmatpush1.msra.mxu0 %v1732
  %1933 = vmatprep.subr.mxu0 0.0
  %1934 = vmatpush1.msra.mxu0 %v1733
  %1935 = vmatprep.subr.mxu0 0.0
  %1936 = vmatpush1.msra.mxu0 %v1734
  %1937 = vmatprep.subr.mxu0 0.0
  %1938 = vmatpush1.msra.mxu0 %v1735
  %1939 = vmatprep.subr.mxu0 0.0
  %1940 = vmatpush1.msra.mxu0 %v1736
  %1941 = vmatprep.subr.mxu0 0.0
  %1942 = vmatpush1.msra.mxu0 %v1737
  %1943 = vmatprep.subr.mxu0 0.0
  %1944 = vmatpush1.msra.mxu0 %v1738
  %1945 = vmatprep.mubr.f32.mxu0 %v1670
  %1946 = vmatmul.mubr.f32.gmra.mrb[0].mxu0 %v1669
  %v1947 = vpop.f32.mrb[0].mxu0
  %v1948 = vadd.f32 %v1878, %v1947
  %v1949 = vpop.f32.mrb[0].mxu0
  %1950 = vdwg.mxu0
  %1951 = vmatprep.subr.mxu0 0.0
  %1952 = vmatpush1.msra.mxu0 %v1739
  %1953 = vmatprep.subr.mxu0 0.0
  %1954 = vmatpush1.msra.mxu0 %v1740
  %1955 = vmatprep.subr.mxu0 0.0
  %1956 = vmatpush1.msra.mxu0 %v1741
  %1957 = vmatprep.subr.mxu0 0.0
  %1958 = vmatpush1.msra.mxu0 %v1742
  %1959 = vmatprep.subr.mxu0 0.0
  %1960 = vmatpush1.msra.mxu0 %v1743
  %1961 = vmatprep.subr.mxu0 0.0
  %1962 = vmatpush1.msra.mxu0 %v1744
  %1963 = vmatprep.subr.mxu0 0.0
  %1964 = vmatpush1.msra.mxu0 %v1745
  %1965 = vmatprep.subr.mxu0 0.0
  %1966 = vmatpush1.msra.mxu0 %v1746
  %1967 = vmatprep.subr.mxu0 0.0
  %1968 = vmatpush1.msra.mxu0 %v1747
  %1969 = vmatprep.subr.mxu0 0.0
  %1970 = vmatpush1.msra.mxu0 %v1748
  %1971 = vmatprep.subr.mxu0 0.0
  %1972 = vmatpush1.msra.mxu0 %v1749
  %1973 = vmatprep.subr.mxu0 0.0
  %1974 = vmatpush1.msra.mxu0 %v1750
  %1975 = vmatprep.subr.mxu0 0.0
  %1976 = vmatpush1.msra.mxu0 %v1751
  %1977 = vmatprep.subr.mxu0 0.0
  %1978 = vmatpush1.msra.mxu0 %v1752
  %1979 = vmatprep.subr.mxu0 0.0
  %1980 = vmatpush1.msra.mxu0 %v1753
  %1981 = vmatprep.subr.mxu0 0.0
  %1982 = vmatpush1.msra.mxu0 %v1754
  %1983 = vmatprep.subr.mxu0 0.0
  %1984 = vmatpush1.msra.mxu0 %v1755
  %1985 = vmatprep.subr.mxu0 0.0
  %1986 = vmatpush1.msra.mxu0 %v1756
  %1987 = vmatprep.subr.mxu0 0.0
  %1988 = vmatpush1.msra.mxu0 %v1757
  %1989 = vmatprep.subr.mxu0 0.0
  %1990 = vmatpush1.msra.mxu0 %v1758
  %1991 = vmatprep.subr.mxu0 0.0
  %1992 = vmatpush1.msra.mxu0 %v1759
  %1993 = vmatprep.subr.mxu0 0.0
  %1994 = vmatpush1.msra.mxu0 %v1760
  %1995 = vmatprep.subr.mxu0 0.0
  %1996 = vmatpush1.msra.mxu0 %v1761
  %1997 = vmatprep.subr.mxu0 0.0
  %1998 = vmatpush1.msra.mxu0 %v1762
  %1999 = vmatprep.subr.mxu0 0.0
  %2000 = vmatpush1.msra.mxu0 %v1763
  %2001 = vmatprep.subr.mxu0 0.0
  %2002 = vmatpush1.msra.mxu0 %v1764
  %2003 = vmatprep.subr.mxu0 0.0
  %2004 = vmatpush1.msra.mxu0 %v1765
  %2005 = vmatprep.subr.mxu0 0.0
  %2006 = vmatpush1.msra.mxu0 %v1766
  %2007 = vmatprep.subr.mxu0 0.0
  %2008 = vmatpush1.msra.mxu0 %v1767
  %2009 = vmatprep.subr.mxu0 0.0
  %2010 = vmatpush1.msra.mxu0 %v1768
  %2011 = vmatprep.subr.mxu0 0.0
  %2012 = vmatpush1.msra.mxu0 %v1769
  %2013 = vmatprep.subr.mxu0 0.0
  %2014 = vmatpush1.msra.mxu0 %v1770
  %2015 = vmatprep.mubr.f32.mxu0 %v1672
  %2016 = vmatmul.mubr.f32.gmra.mrb[0].mxu0 %v1671
  %v2017 = vpop.f32.mrb[0].mxu0
  %v2018 = vadd.f32 %v1948, %v2017
  %v2019 = vpop.f32.mrb[0].mxu0
  %2020 = vdwg.mxu0
  %2021 = vmatprep.subr.mxu0 0.0
  %2022 = vmatpush1.msra.mxu0 %v1771
  %2023 = vmatprep.subr.mxu0 0.0
  %2024 = vmatpush1.msra.mxu0 %v1772
  %2025 = vmatprep.subr.mxu0 0.0
  %2026 = vmatpush1.msra.mxu0 %v1773
  %2027 = vmatprep.subr.mxu0 0.0
  %2028 = vmatpush1.msra.mxu0 %v1774
  %2029 = vmatprep.subr.mxu0 0.0
  %2030 = vmatpush1.msra.mxu0 %v1775
  %2031 = vmatprep.subr.mxu0 0.0
  %2032 = vmatpush1.msra.mxu0 %v1776
  %2033 = vmatprep.subr.mxu0 0.0
  %2034 = vmatpush1.msra.mxu0 %v1777
  %2035 = vmatprep.subr.mxu0 0.0
  %2036 = vmatpush1.msra.mxu0 %v1778
  %2037 = vmatprep.subr.mxu0 0.0
  %2038 = vmatpush1.msra.mxu0 %v1779
  %2039 = vmatprep.subr.mxu0 0.0
  %2040 = vmatpush1.msra.mxu0 %v1780
  %2041 = vmatprep.subr.mxu0 0.0
  %2042 = vmatpush1.msra.mxu0 %v1781
  %2043 = vmatprep.subr.mxu0 0.0
  %2044 = vmatpush1.msra.mxu0 %v1782
  %2045 = vmatprep.subr.mxu0 0.0
  %2046 = vmatpush1.msra.mxu0 %v1783
  %2047 = vmatprep.subr.mxu0 0.0
  %2048 = vmatpush1.msra.mxu0 %v1784
  %2049 = vmatprep.subr.mxu0 0.0
  %2050 = vmatpush1.msra.mxu0 %v1785
  %2051 = vmatprep.subr.mxu0 0.0
  %2052 = vmatpush1.msra.mxu0 %v1786
  %2053 = vmatprep.subr.mxu0 0.0
  %2054 = vmatpush1.msra.mxu0 %v1787
  %2055 = vmatprep.subr.mxu0 0.0
  %2056 = vmatpush1.msra.mxu0 %v1788
  %2057 = vmatprep.subr.mxu0 0.0
  %2058 = vmatpush1.msra.mxu0 %v1789
  %2059 = vmatprep.subr.mxu0 0.0
  %2060 = vmatpush1.msra.mxu0 %v1790
  %2061 = vmatprep.subr.mxu0 0.0
  %2062 = vmatpush1.msra.mxu0 %v1791
  %2063 = vmatprep.subr.mxu0 0.0
  %2064 = vmatpush1.msra.mxu0 %v1792
  %2065 = vmatprep.subr.mxu0 0.0
  %2066 = vmatpush1.msra.mxu0 %v1793
  %2067 = vmatprep.subr.mxu0 0.0
  %2068 = vmatpush1.msra.mxu0 %v1794
  %2069 = vmatprep.subr.mxu0 0.0
  %2070 = vmatpush1.msra.mxu0 %v1795
  %2071 = vmatprep.subr.mxu0 0.0
  %2072 = vmatpush1.msra.mxu0 %v1796
  %2073 = vmatprep.subr.mxu0 0.0
  %2074 = vmatpush1.msra.mxu0 %v1797
  %2075 = vmatprep.subr.mxu0 0.0
  %2076 = vmatpush1.msra.mxu0 %v1798
  %2077 = vmatprep.subr.mxu0 0.0
  %2078 = vmatpush1.msra.mxu0 %v1799
  %2079 = vmatprep.subr.mxu0 0.0
  %2080 = vmatpush1.msra.mxu0 0.0
  %2081 = vmatprep.subr.mxu0 0.0
  %2082 = vmatpush1.msra.mxu0 0.0
  %2083 = vmatprep.subr.mxu0 0.0
  %2084 = vmatpush1.msra.mxu0 0.0
  %2085 = vmatprep.mubr.f32.mxu0 %v1809
  %2086 = vmatmul.mubr.f32.gmra.mrb[0].mxu0 %v1673
  %v2087 = vpop.f32.mrb[0].mxu0
  %v2088 = vadd.f32 %v2018, %v2087
  %v2089 = vpop.f32.mrb[0].mxu0
  %2090 = vdwg.mxu0
  %vm2091 = vcmp.gt.f32.partialorder %v2088, 0.0
  %v2092 = vmul.f32 %v2088, 0.01
  %v2093 = vsel %vm2091, %v2088, %v2092
  %v2094 = vld [vmem:[%s7] sm:$0xff]
  %v2095 = vld [vmem:[%s7 + $0x8] sm:$0xff]
  %v2096 = vld [vmem:[%s7 + $0x10] sm:$0xff]
  %v2097 = vld [vmem:[%s7 + $0x18] sm:$0xff]
  %v2098 = vld [vmem:[%s7 + $0x20] sm:$0xff]
  %v2099 = vld [vmem:[%s7 + $0x28] sm:$0xff]
  %v2100 = vld [vmem:[%s7 + $0x30] sm:$0xff]
  %v2101 = vld [vmem:[%s7 + $0x38] sm:$0xff]
  %v2102 = vld [vmem:[%s7 + $0x40] sm:$0xff]
  %v2103 = vld [vmem:[%s7 + $0x48] sm:$0xff]
  %v2104 = vld [vmem:[%s7 + $0x50] sm:$0xff]
  %v2105 = vld [vmem:[%s7 + $0x58] sm:$0xff]
  %v2106 = vld [vmem:[%s7 + $0x60] sm:$0xf]
  %v2107 = vld [vmem:[%s8] sm:$0x1]
  %v2109 = vlaneseq
  %v2110 = vshrl.u32 %v2109, 7
  %v2111 = vsub.s32 0, %v2110
  %v2112 = vrot.slane %v2107, %v2111
  %vm2114 = vcmask 818176
  %v2116 = vsel %vm2114, %v2093, 0
  %vm2118 = vcmask 1043456
  %v2120 = vsel %vm2118, %v2106, 0
  %2122 = vmatprep.subr.mxu0 0.0
  %2123 = vmatpush1.msra.mxu0 %v2094
  %2124 = vmatprep.subr.mxu0 0.0
  %2125 = vmatpush1.msra.mxu0 %v2095
  %2126 = vmatprep.subr.mxu0 0.0
  %2127 = vmatpush1.msra.mxu0 %v2096
  %2128 = vmatprep.subr.mxu0 0.0
  %2129 = vmatpush1.msra.mxu0 %v2097
  %2130 = vmatprep.subr.mxu0 0.0
  %2131 = vmatpush1.msra.mxu0 %v2098
  %2132 = vmatprep.subr.mxu0 0.0
  %2133 = vmatpush1.msra.mxu0 %v2099
  %2134 = vmatprep.subr.mxu0 0.0
  %2135 = vmatpush1.msra.mxu0 %v2100
  %2136 = vmatprep.subr.mxu0 0.0
  %2137 = vmatpush1.msra.mxu0 %v2101
  %2138 = vmatprep.subr.mxu0 0.0
  %2139 = vmatpush1.msra.mxu0 %v2102
  %2140 = vmatprep.subr.mxu0 0.0
  %2141 = vmatpush1.msra.mxu0 %v2103
  %2142 = vmatprep.subr.mxu0 0.0
  %2143 = vmatpush1.msra.mxu0 %v2104
  %2144 = vmatprep.subr.mxu0 0.0
  %2145 = vmatpush1.msra.mxu0 %v2105
  %2146 = vmatprep.subr.mxu0 0.0
  %2147 = vmatpush1.msra.mxu0 %v2120
  %2148 = vmatprep.subr.mxu0 0.0
  %2149 = vmatpush1.msra.mxu0 0.0
  %2150 = vmatprep.subr.mxu0 0.0
  %2151 = vmatpush1.msra.mxu0 0.0
  %2152 = vmatprep.subr.mxu0 0.0
  %2153 = vmatpush1.msra.mxu0 0.0
  %2154 = vmatprep.subr.mxu0 0.0
  %2155 = vmatpush1.msra.mxu0 0.0
  %2156 = vmatprep.subr.mxu0 0.0
  %2157 = vmatpush1.msra.mxu0 0.0
  %2158 = vmatprep.subr.mxu0 0.0
  %2159 = vmatpush1.msra.mxu0 0.0
  %2160 = vmatprep.subr.mxu0 0.0
  %2161 = vmatpush1.msra.mxu0 0.0
  %2162 = vmatprep.subr.mxu0 0.0
  %2163 = vmatpush1.msra.mxu0 0.0
  %2164 = vmatprep.subr.mxu0 0.0
  %2165 = vmatpush1.msra.mxu0 0.0
  %2166 = vmatprep.subr.mxu0 0.0
  %2167 = vmatpush1.msra.mxu0 0.0
  %2168 = vmatprep.subr.mxu0 0.0
  %2169 = vmatpush1.msra.mxu0 0.0
  %2170 = vmatprep.subr.mxu0 0.0
  %2171 = vmatpush1.msra.mxu0 0.0
  %2172 = vmatprep.subr.mxu0 0.0
  %2173 = vmatpush1.msra.mxu0 0.0
  %2174 = vmatprep.subr.mxu0 0.0
  %2175 = vmatpush1.msra.mxu0 0.0
  %2176 = vmatprep.subr.mxu0 0.0
  %2177 = vmatpush1.msra.mxu0 0.0
  %2178 = vmatprep.subr.mxu0 0.0
  %2179 = vmatpush1.msra.mxu0 0.0
  %2180 = vmatprep.subr.mxu0 0.0
  %2181 = vmatpush1.msra.mxu0 0.0
  %2182 = vmatprep.subr.mxu0 0.0
  %2183 = vmatpush1.msra.mxu0 0.0
  %2184 = vmatprep.subr.mxu0 0.0
  %2185 = vmatpush1.msra.mxu0 0.0
  %2186 = vmatprep.mubr.f32.mxu0 0.0
  %2187 = vmatmul.mubr.f32.gmra.mrb[0].mxu0 %v2116
  %v2188 = vpop.f32.mrb[0].mxu0
  %v2189 = vadd.f32 %v2112, %v2188
  %v2190 = vpop.f32.mrb[0].mxu0
  %2191 = vdwg.mxu0
  %vm2192 = vcmp.gt.f32.partialorder %v2189, 0.0
  %v2193 = vmul.f32 %v2189, 0.01
  %v2194 = vsel %vm2192, %v2189, %v2193
  %v2195 = vld [vmem:[%s9] sm:$0xff]
  %v2196 = vld [vmem:[%s9 + $0x8] sm:$0xff]
  %v2197 = vld [vmem:[%s9 + $0x10] sm:$0xff]
  %v2198 = vld [vmem:[%s9 + $0x18] sm:$0xff]
  %v2199 = vld [vmem:[%s9 + $0x20] sm:$0xff]
  %v2200 = vld [vmem:[%s9 + $0x28] sm:$0xff]
  %v2201 = vld [vmem:[%s9 + $0x30] sm:$0x3]
  %v2202 = vld [vmem:[%s10] sm:$0x1]
  %v2204 = vlaneseq
  %v2205 = vshrl.u32 %v2204, 7
  %v2206 = vsub.s32 0, %v2205
  %v2207 = vrot.slane %v2202, %v2206
  %vm2209 = vcmask 408576
  %v2211 = vsel %vm2209, %v2194, 0
  %vm2213 = vcmask 1041408
  %v2215 = vsel %vm2213, %v2201, 0
  %2217 = vmatprep.subr.mxu0 0.0
  %2218 = vmatpush1.msra.mxu0 %v2195
  %2219 = vmatprep.subr.mxu0 0.0
  %2220 = vmatpush1.msra.mxu0 %v2196
  %2221 = vmatprep.subr.mxu0 0.0
  %2222 = vmatpush1.msra.mxu0 %v2197
  %2223 = vmatprep.subr.mxu0 0.0
  %2224 = vmatpush1.msra.mxu0 %v2198
  %2225 = vmatprep.subr.mxu0 0.0
  %2226 = vmatpush1.msra.mxu0 %v2199
  %2227 = vmatprep.subr.mxu0 0.0
  %2228 = vmatpush1.msra.mxu0 %v2200
  %2229 = vmatprep.subr.mxu0 0.0
  %2230 = vmatpush1.msra.mxu0 %v2215
  %2231 = vmatprep.subr.mxu0 0.0
  %2232 = vmatpush1.msra.mxu0 0.0
  %2233 = vmatprep.subr.mxu0 0.0
  %2234 = vmatpush1.msra.mxu0 0.0
  %2235 = vmatprep.subr.mxu0 0.0
  %2236 = vmatpush1.msra.mxu0 0.0
  %2237 = vmatprep.subr.mxu0 0.0
  %2238 = vmatpush1.msra.mxu0 0.0
  %2239 = vmatprep.subr.mxu0 0.0
  %2240 = vmatpush1.msra.mxu0 0.0
  %2241 = vmatprep.subr.mxu0 0.0
  %2242 = vmatpush1.msra.mxu0 0.0
  %2243 = vmatprep.subr.mxu0 0.0
  %2244 = vmatpush1.msra.mxu0 0.0
  %2245 = vmatprep.subr.mxu0 0.0
  %2246 = vmatpush1.msra.mxu0 0.0
  %2247 = vmatprep.subr.mxu0 0.0
  %2248 = vmatpush1.msra.mxu0 0.0
  %2249 = vmatprep.subr.mxu0 0.0
  %2250 = vmatpush1.msra.mxu0 0.0
  %2251 = vmatprep.subr.mxu0 0.0
  %2252 = vmatpush1.msra.mxu0 0.0
  %2253 = vmatprep.subr.mxu0 0.0
  %2254 = vmatpush1.msra.mxu0 0.0
  %2255 = vmatprep.subr.mxu0 0.0
  %2256 = vmatpush1.msra.mxu0 0.0
  %2257 = vmatprep.subr.mxu0 0.0
  %2258 = vmatpush1.msra.mxu0 0.0
  %2259 = vmatprep.subr.mxu0 0.0
  %2260 = vmatpush1.msra.mxu0 0.0
  %2261 = vmatprep.subr.mxu0 0.0
  %2262 = vmatpush1.msra.mxu0 0.0
  %2263 = vmatprep.subr.mxu0 0.0
  %2264 = vmatpush1.msra.mxu0 0.0
  %2265 = vmatprep.subr.mxu0 0.0
  %2266 = vmatpush1.msra.mxu0 0.0
  %2267 = vmatprep.subr.mxu0 0.0
  %2268 = vmatpush1.msra.mxu0 0.0
  %2269 = vmatprep.subr.mxu0 0.0
  %2270 = vmatpush1.msra.mxu0 0.0
  %2271 = vmatprep.subr.mxu0 0.0
  %2272 = vmatpush1.msra.mxu0 0.0
  %2273 = vmatprep.subr.mxu0 0.0
  %2274 = vmatpush1.msra.mxu0 0.0
  %2275 = vmatprep.subr.mxu0 0.0
  %2276 = vmatpush1.msra.mxu0 0.0
  %2277 = vmatprep.subr.mxu0 0.0
  %2278 = vmatpush1.msra.mxu0 0.0
  %2279 = vmatprep.subr.mxu0 0.0
  %2280 = vmatpush1.msra.mxu0 0.0
  %2281 = vmatprep.mubr.f32.mxu0 0.0
  %2282 = vmatmul.mubr.f32.gmra.mrb[0].mxu0 %v2211
  %v2283 = vpop.f32.mrb[0].mxu0
  %v2284 = vadd.f32 %v2207, %v2283
  %v2285 = vpop.f32.mrb[0].mxu0
  %2286 = vdwg.mxu0
  %vm2287 = vcmp.gt.f32.partialorder %v2284, 0.0
  %v2288 = vmul.f32 %v2284, 0.01
  %v2289 = vsel %vm2287, %v2284, %v2288
  %v2290 = vld [vmem:[%s11] sm:$0xff]
  %v2291 = vld [vmem:[%s11 + $0x8] sm:$0x3]
  %v2292 = vld [vmem:[#allocation2] sm:$0x1]
  %v2294 = vlaneseq
  %v2295 = vshrl.u32 %v2294, 7
  %v2296 = vsub.s32 0, %v2295
  %v2297 = vrot.slane %v2292, %v2296
  %vm2299 = vcmask 80896
  %v2301 = vsel %vm2299, %v2289, 0
  %v2304 = vsel %vm2213, %v2291, 0
  %2306 = vmatprep.subr.mxu0 0.0
  %2307 = vmatpush1.msra.mxu0 %v2290
  %2308 = vmatprep.subr.mxu0 0.0
  %2309 = vmatpush1.msra.mxu0 %v2304
  %2310 = vmatprep.subr.mxu0 0.0
  %2311 = vmatpush1.msra.mxu0 0.0
  %2312 = vmatprep.subr.mxu0 0.0
  %2313 = vmatpush1.msra.mxu0 0.0
  %2314 = vmatprep.subr.mxu0 0.0
  %2315 = vmatpush1.msra.mxu0 0.0
  %2316 = vmatprep.subr.mxu0 0.0
  %2317 = vmatpush1.msra.mxu0 0.0
  %2318 = vmatprep.subr.mxu0 0.0
  %2319 = vmatpush1.msra.mxu0 0.0
  %2320 = vmatprep.subr.mxu0 0.0
  %2321 = vmatpush1.msra.mxu0 0.0
  %2322 = vmatprep.subr.mxu0 0.0
  %2323 = vmatpush1.msra.mxu0 0.0
  %2324 = vmatprep.subr.mxu0 0.0
  %2325 = vmatpush1.msra.mxu0 0.0
  %2326 = vmatprep.subr.mxu0 0.0
  %2327 = vmatpush1.msra.mxu0 0.0
  %2328 = vmatprep.subr.mxu0 0.0
  %2329 = vmatpush1.msra.mxu0 0.0
  %2330 = vmatprep.subr.mxu0 0.0
  %2331 = vmatpush1.msra.mxu0 0.0
  %2332 = vmatprep.subr.mxu0 0.0
  %2333 = vmatpush1.msra.mxu0 0.0
  %2334 = vmatprep.subr.mxu0 0.0
  %2335 = vmatpush1.msra.mxu0 0.0
  %2336 = vmatprep.subr.mxu0 0.0
  %2337 = vmatpush1.msra.mxu0 0.0
  %2338 = vmatprep.subr.mxu0 0.0
  %2339 = vmatpush1.msra.mxu0 0.0
  %2340 = vmatprep.subr.mxu0 0.0
  %2341 = vmatpush1.msra.mxu0 0.0
  %2342 = vmatprep.subr.mxu0 0.0
  %2343 = vmatpush1.msra.mxu0 0.0
  %2344 = vmatprep.subr.mxu0 0.0
  %2345 = vmatpush1.msra.mxu0 0.0
  %2346 = vmatprep.subr.mxu0 0.0
  %2347 = vmatpush1.msra.mxu0 0.0
  %2348 = vmatprep.subr.mxu0 0.0
  %2349 = vmatpush1.msra.mxu0 0.0
  %2350 = vmatprep.subr.mxu0 0.0
  %2351 = vmatpush1.msra.mxu0 0.0
  %2352 = vmatprep.subr.mxu0 0.0
  %2353 = vmatpush1.msra.mxu0 0.0
  %2354 = vmatprep.subr.mxu0 0.0
  %2355 = vmatpush1.msra.mxu0 0.0
  %2356 = vmatprep.subr.mxu0 0.0
  %2357 = vmatpush1.msra.mxu0 0.0
  %2358 = vmatprep.subr.mxu0 0.0
  %2359 = vmatpush1.msra.mxu0 0.0
  %2360 = vmatprep.subr.mxu0 0.0
  %2361 = vmatpush1.msra.mxu0 0.0
  %2362 = vmatprep.subr.mxu0 0.0
  %2363 = vmatpush1.msra.mxu0 0.0
  %2364 = vmatprep.subr.mxu0 0.0
  %2365 = vmatpush1.msra.mxu0 0.0
  %2366 = vmatprep.subr.mxu0 0.0
  %2367 = vmatpush1.msra.mxu0 0.0
  %2368 = vmatprep.subr.mxu0 0.0
  %2369 = vmatpush1.msra.mxu0 0.0
  %2370 = vmatprep.mubr.f32.mxu0 0.0
  %2371 = vmatmul.mubr.f32.gmra.mrb[0].mxu0 %v2301
  %v2372 = vpop.f32.mrb[0].mxu0
  %v2373 = vadd.f32 %v2297, %v2372
  %v2374 = vpop.f32.mrb[0].mxu0
  %2375 = vdwg.mxu0
  %vm2376 = vcmask 7168
  %2377 = vst.msk [vmem:[%s13] sm:$0xff] %vm2376, %v2373
  // Predicated region
  $region54: #{net_forward.1} parent=0 // pred_check
    _
  $region55: #{net_forward.1} parent=0 // pred_check_branch
    %2379 = sbr.rel (0) target = $region57
  $region56: #{net_forward.1} parent=0 // pred_region
    _
  $region57: #{net_forward.1} parent=0 // pred_fallthru
    _
  // Predicated region
  $region58: #{net_forward.1} parent=0 // pred_check
    _
  $region59: #{net_forward.1} parent=0 // pred_check_branch
    %2381 = sbr.rel (0) target = $region61
  $region60: #{net_forward.1} parent=0 // pred_region
    _
  $region61: #{net_forward.1} parent=0 // pred_fallthru
    _

</llo_original>
